<compile_context>
chip_gen: v7x
topology: tpu7x:2x2x1
jax: 0.10.0
libtpu: 0.0.40
codegen_flags: <defaults>
</compile_context>

<pallas_src>
import functools

import jax
import jax.numpy as jnp
from jax import lax
from jax.experimental import pallas as pl
from jax.experimental.pallas import tpu as pltpu


_NEG = -1e30          # finite "-inf" (avoids inf-inf NaNs in the online lse)
_OUT_LANES = 128      # lane-dense output width


def _round_up(x, m):
    return (x + m - 1) // m * m


def _choose_vtile(v, max_tv=512):
    """Pad vocab dim to a lane multiple and pick a V-tile that divides it."""
    vpad = _round_up(max(v, 1), 128)
    if vpad <= max_tv:
        return vpad, vpad
    vpad = _round_up(v, max_tv)
    return vpad, max_tv


def _pad2(a, rows, cols):
    return jnp.pad(a, ((0, rows - a.shape[0]), (0, cols - a.shape[1])))


# ----------------------------- Pallas kernels ------------------------------

def _online_update(logits, col, idx_col, m_scr, l_scr, p_scr):
    """One vocab-tile step of the online logsumexp + target-logit pick."""
    # picked raw logit (exactly one column over all tiles matches idx >= 0)
    p_scr[...] += jnp.sum(jnp.where(col == idx_col, logits, 0.0),
                          axis=1, keepdims=True)
    m_prev = m_scr[...]
    m_new = jnp.maximum(m_prev, jnp.max(logits, axis=1, keepdims=True))
    l_scr[...] = (l_scr[...] * jnp.exp(m_prev - m_new)
                  + jnp.sum(jnp.exp(logits - m_new), axis=1, keepdims=True))
    m_scr[...] = m_new


def _head_kernel(x_ref, w_ref, idx_ref, out_ref, m_scr, l_scr, p_scr,
                 *, v_real, tv):
    """Head: logits = x @ W streamed over V tiles, online log_softmax, gather.

    x: (BT, D) bf16, w: (D, TV) bf16, idx: (BT, 1) i32, out: (BT, 128) f32.
    """
    vi = pl.program_id(1)

    @pl.when(vi == 0)
    def _init():
        m_scr[...] = jnp.full_like(m_scr, _NEG)
        l_scr[...] = jnp.zeros_like(l_scr)
        p_scr[...] = jnp.zeros_like(p_scr)

    logits = jnp.dot(x_ref[...], w_ref[...], preferred_element_type=jnp.float32)
    col = vi * tv + lax.broadcasted_iota(jnp.int32, logits.shape, 1)
    logits = jnp.where(col < v_real, logits, _NEG)   # padded columns -> -inf
    _online_update(logits, col, idx_ref[...], m_scr, l_scr, p_scr)

    @pl.when(vi == pl.num_programs(1) - 1)
    def _finalize():
        lse = m_scr[...] + jnp.log(l_scr[...])
        out_ref[...] = jnp.broadcast_to(p_scr[...] - lse, out_ref.shape)


def _tail_kernel(x_ref, pw_ref, ow_ref, idx_ref, out_ref,
                 m_scr, l_scr, p_scr, h_scr, *, n_real, tv):
    """Tail cluster: h = x @ Wp (once per batch tile), logits = h @ Wo streamed
    over V tiles, online log_softmax, masked gather (idx < 0 -> contributes 0).

    x: (BT, D) bf16, pw: (D, d_pad) bf16, ow: (d_pad, TV) bf16,
    idx: (BT, 1) i32, out: (BT, 128) f32.
    """
    vi = pl.program_id(1)

    @pl.when(vi == 0)
    def _init():
        m_scr[...] = jnp.full_like(m_scr, _NEG)
        l_scr[...] = jnp.zeros_like(l_scr)
        p_scr[...] = jnp.zeros_like(p_scr)
        h = jnp.dot(x_ref[...], pw_ref[...],
                    preferred_element_type=jnp.float32)
        h_scr[...] = h.astype(h_scr.dtype)

    logits = jnp.dot(h_scr[...], ow_ref[...],
                     preferred_element_type=jnp.float32)
    col = vi * tv + lax.broadcasted_iota(jnp.int32, logits.shape, 1)
    logits = jnp.where(col < n_real, logits, _NEG)
    _online_update(logits, col, idx_ref[...], m_scr, l_scr, p_scr)

    @pl.when(vi == pl.num_programs(1) - 1)
    def _finalize():
        lse = m_scr[...] + jnp.log(l_scr[...])
        res = jnp.where(idx_ref[...] >= 0, p_scr[...] - lse, 0.0)
        out_ref[...] = jnp.broadcast_to(res, out_ref.shape)


# ----------------------------- pallas_call wrappers -------------------------

def _head_call(x, w_t, idx, v_real, tv, bt):
    bpad, d = x.shape
    vpad = w_t.shape[1]
    nb, nv = bpad // bt, vpad // tv
    kernel = functools.partial(_head_kernel, v_real=v_real, tv=tv)
    cost = pl.CostEstimate(
        flops=2 * bpad * d * vpad,
        transcendentals=bpad * vpad,
        bytes_accessed=x.size * 2 + w_t.size * 2 + bpad * 4
        + bpad * _OUT_LANES * 4)
    return pl.pallas_call(
        kernel,
        out_shape=jax.ShapeDtypeStruct((bpad, _OUT_LANES), jnp.float32),
        grid_spec=pltpu.PrefetchScalarGridSpec(
            num_scalar_prefetch=0,
            grid=(nb, nv),
            in_specs=[
                pl.BlockSpec((bt, d), lambda bi, vi: (bi, 0)),
                pl.BlockSpec((d, tv), lambda bi, vi: (0, vi)),
                pl.BlockSpec((bt, 1), lambda bi, vi: (bi, 0)),
            ],
            out_specs=pl.BlockSpec((bt, _OUT_LANES), lambda bi, vi: (bi, 0)),
            scratch_shapes=[pltpu.VMEM((bt, 1), jnp.float32)] * 3),
        compiler_params=pltpu.CompilerParams(
            dimension_semantics=("parallel", "arbitrary")),
        cost_estimate=cost,
    )(x, w_t, idx)


def _tail_call(x, pw_t, ow_t, idx, n_real, tv, bt):
    bpad, d = x.shape
    d_pad = pw_t.shape[1]
    npad = ow_t.shape[1]
    nb, nv = bpad // bt, npad // tv
    kernel = functools.partial(_tail_kernel, n_real=n_real, tv=tv)
    cost = pl.CostEstimate(
        flops=2 * bpad * d * d_pad + 2 * bpad * d_pad * npad,
        transcendentals=bpad * npad,
        bytes_accessed=x.size * 2 + pw_t.size * 2 + ow_t.size * 2
        + bpad * 4 + bpad * _OUT_LANES * 4)
    return pl.pallas_call(
        kernel,
        out_shape=jax.ShapeDtypeStruct((bpad, _OUT_LANES), jnp.float32),
        grid_spec=pltpu.PrefetchScalarGridSpec(
            num_scalar_prefetch=0,
            grid=(nb, nv),
            in_specs=[
                pl.BlockSpec((bt, d), lambda bi, vi: (bi, 0)),
                pl.BlockSpec((d, d_pad), lambda bi, vi: (0, 0)),
                pl.BlockSpec((d_pad, tv), lambda bi, vi: (0, vi)),
                pl.BlockSpec((bt, 1), lambda bi, vi: (bi, 0)),
            ],
            out_specs=pl.BlockSpec((bt, _OUT_LANES), lambda bi, vi: (bi, 0)),
            scratch_shapes=[pltpu.VMEM((bt, 1), jnp.float32)] * 3
            + [pltpu.VMEM((bt, d_pad), jnp.bfloat16)]),
        compiler_params=pltpu.CompilerParams(
            dimension_semantics=("parallel", "arbitrary")),
        cost_estimate=cost,
    )(x, pw_t, ow_t, idx)


# ----------------------------- module wrapper -------------------------------

def xavier_uniform(key, shape):
    """nn.init.xavier_uniform_ for a Linear weight of shape (out, in)."""
    fan_out, fan_in = shape
    a = (6.0 / (fan_in + fan_out)) ** 0.5
    return jax.random.uniform(key, shape, jnp.float32, minval=-a, maxval=a)


class AdaptiveSoftmaxPallas:
    def __init__(self, vocab_size, input_dim, cutoff, factor=4.0, seed=0,
                 v_tile=512, b_tile=128):
        if vocab_size > cutoff[-1]:
            cutoff = list(cutoff) + [vocab_size]
        else:
            assert vocab_size == cutoff[-1]
        self.vocab_size = vocab_size
        self.cutoff = cutoff
        self.input_dim = input_dim
        self.shortlist_size = cutoff[0]
        self.b_tile = b_tile
        output_dim = cutoff[0] + len(cutoff) - 1  # head output dim

        key = jax.random.PRNGKey(seed)
        n_tail = len(cutoff) - 1
        keys = jax.random.split(key, 1 + 2 * n_tail)

        # head: Linear(input_dim, output_dim, bias=False); stored transposed
        # (in, out), zero-padded to a lane multiple, streamed as bf16.
        head_w = xavier_uniform(keys[0], (output_dim, input_dim))
        self.head_v = output_dim
        vh_pad, self.head_tv = _choose_vtile(output_dim, v_tile)
        self.head_w_t = _pad2(head_w.T, input_dim, vh_pad).astype(jnp.bfloat16)

        # tails: Sequential(Linear(D, d_i), Dropout(p), Linear(d_i, n_i))
        # stored transposed + padded: proj (D, d_pad), out (d_pad, n_pad).
        self.tail = []
        for i in range(n_tail):
            dim = int(input_dim // factor ** (i + 1))
            n_i = cutoff[i + 1] - cutoff[i]
            proj_w = xavier_uniform(keys[1 + 2 * i], (dim, input_dim))
            out_w = xavier_uniform(keys[2 + 2 * i], (n_i, dim))
            d_pad = _round_up(max(dim, 1), 128)
            n_pad, tv_i = _choose_vtile(n_i, v_tile)
            pw_t = _pad2(proj_w.T, input_dim, d_pad).astype(jnp.bfloat16)
            ow_t = _pad2(out_w.T, d_pad, n_pad).astype(jnp.bfloat16)
            self.tail.append((pw_t, ow_t, n_i, tv_i))

    @functools.partial(jax.jit, static_argnums=0)
    def forward(self, inputs, target):
        """inputs: (B, input_dim) f32, target: (B,) i32 in [0, vocab)."""
        B = inputs.shape[0]
        bt = self.b_tile
        bpad = _round_up(B, bt)
        c0 = self.shortlist_size

        target = target.astype(jnp.int32)
        tpad = jnp.pad(target, (0, bpad - B))
        x = jnp.pad(inputs, ((0, bpad - B), (0, 0))).astype(jnp.bfloat16)

        # per-row head gather index (shortlist word or cluster token), exactly
        # as gather_inds in the PyTorch loop.
        gather = jnp.where(tpad < c0, tpad, 0)
        for i in range(1, len(self.cutoff)):
            low, high = self.cutoff[i - 1], self.cutoff[i]
            gather = jnp.where((tpad >= low) & (tpad < high), c0 + i - 1,
                               gather)

        out = _head_call(x, self.head_w_t, gather[:, None].astype(jnp.int32),
                         self.head_v, self.head_tv, bt)[:, 0]

        # tail clusters: dense compute per cluster; rows outside the cluster
        # carry idx = -1 and contribute exactly 0 (matches index_select path).
        for i in range(1, len(self.cutoff)):
            low, high = self.cutoff[i - 1], self.cutoff[i]
            in_c = (tpad >= low) & (tpad < high)
            rel = jnp.where(in_c, tpad - low, -1)[:, None].astype(jnp.int32)
            pw_t, ow_t, n_i, tv_i = self.tail[i - 1]
            out = out + _tail_call(x, pw_t, ow_t, rel, n_i, tv_i, bt)[:, 0]

        output = out[:B]
        # tmp * 0.0 term in the reference is exactly 0 (bias-free linears on a
        # zero vector), so omitted.
        loss = jnp.mean(-output)
        return output, loss


# --------------------------- pure-JAX reference -----------------------------

def _reference(mod, inputs, target):
    """Same math (bf16 weights/activations, f32 accumulation) without Pallas."""
    B = inputs.shape[0]
    xb = inputs.astype(jnp.bfloat16)
    c0 = mod.shortlist_size

    head_logits = jnp.dot(xb, mod.head_w_t,
                          preferred_element_type=jnp.float32)[:, :mod.head_v]
    head_logp = jax.nn.log_softmax(head_logits, axis=1)

    out = jnp.zeros(B, jnp.float32)
    gather = jnp.where(target < c0, target, 0)
    for i in range(1, len(mod.cutoff)):
        low, high = mod.cutoff[i - 1], mod.cutoff[i]
        in_c = (target >= low) & (target < high)
        gather = jnp.where(in_c, c0 + i - 1, gather)
        pw_t, ow_t, n_i, _ = mod.tail[i - 1]
        h = jnp.dot(xb, pw_t, preferred_element_type=jnp.float32)
        logits = jnp.dot(h.astype(jnp.bfloat16), ow_t,
                         preferred_element_type=jnp.float32)[:, :n_i]
        logp = jax.nn.log_softmax(logits, axis=1)
        rel = jnp.where(in_c, target - low, 0)
        picked = jnp.take_along_axis(logp, rel[:, None], 1)[:, 0]
        out = out + jnp.where(in_c, picked, 0.0)
    out = out + jnp.take_along_axis(head_logp, gather[:, None], 1)[:, 0]
    return out, jnp.mean(-out)


if __name__ == "__main__":
    vocab_size = 48
    input_dim = 64
    batch = 8
    cutoff = [16, 32]

    mod = AdaptiveSoftmaxPallas(vocab_size, input_dim, cutoff, factor=4.0,
                                seed=0)

    key = jax.random.PRNGKey(0)
    kx, kt = jax.random.split(key)
    x = jax.random.normal(kx, (batch, input_dim), jnp.float32)
    target = jax.random.randint(kt, (batch,), 0, vocab_size, jnp.int32)

    output, loss = mod.forward(x, target)
    jax.block_until_ready((output, loss))

    ref_out, ref_loss = _reference(mod, x, target.astype(jnp.int32))
    assert output.shape == (batch,) and loss.shape == ()
    assert jnp.allclose(output, ref_out, atol=2e-3, rtol=2e-3), (output, ref_out)
    assert jnp.allclose(loss, ref_loss, atol=2e-3, rtol=2e-3), (loss, ref_loss)

    print("KERNEL_OK")
</pallas_src>

<mosaic_0001>
module attributes {stable_mosaic.version = 11 : i64} {
  func.func @_tail_kernel(%arg0: i32, %arg1: i32, %arg2: memref<128x64xbf16, #tpu.memory_space<vmem>>, %arg3: memref<64x128xbf16, #tpu.memory_space<vmem>>, %arg4: memref<128x128xbf16, #tpu.memory_space<vmem>>, %arg5: memref<128x1xi32, #tpu.memory_space<vmem>>, %arg6: memref<128x128xf32, #tpu.memory_space<vmem>>, %arg7: memref<128x1xf32, #tpu.memory_space<vmem>>, %arg8: memref<128x1xf32, #tpu.memory_space<vmem>>, %arg9: memref<128x1xf32, #tpu.memory_space<vmem>>, %arg10: memref<128x128xbf16, #tpu.memory_space<vmem>>) attributes {dimension_semantics = [#tpu.dimension_semantics<parallel>, #tpu.dimension_semantics<arbitrary>], iteration_bounds = array<i64: 1, 1>, scalar_prefetch = 0 : i64, scratch_operands = 4 : i64, tpu.core_type = #tpu.core_type<tc>, window_params = [{transform_indices = @transform_0, window_bounds = array<i64: 128, 64>}, {pipeline_mode = #tpu.pipeline_mode<synchronous>, transform_indices = @transform_1, window_bounds = array<i64: 64, 128>}, {transform_indices = @transform_2, window_bounds = array<i64: 128, 128>}, {transform_indices = @transform_3, window_bounds = array<i64: 128, 1>}, {transform_indices = @transform_4, window_bounds = array<i64: 128, 128>}]} {
    %c0_i32 = arith.constant 0 : i32
    %0 = arith.cmpi eq, %arg1, %c0_i32 : i32
    %1 = arith.extui %0 : i1 to i32
    %c0_i32_0 = arith.constant 0 : i32
    %2 = arith.cmpi ne, %1, %c0_i32_0 : i32
    scf.if %2 {
      %cst_25 = arith.constant -1.000000e+30 : f32
      %43 = vector.broadcast %cst_25 : f32 to vector<128x1xf32>
      %c0_26 = arith.constant 0 : index
      %c0_27 = arith.constant 0 : index
      %44 = vector.load %arg7[%c0_26, %c0_27] : memref<128x1xf32, #tpu.memory_space<vmem>>, vector<128x1xf32>
      tpu.vector_store %arg7[%c0_26, %c0_27], %43 {strides = array<i32>} : memref<128x1xf32, #tpu.memory_space<vmem>>, vector<128x1xf32>,
      %cst_28 = arith.constant 0.000000e+00 : f32
      %45 = vector.broadcast %cst_28 : f32 to vector<128x1xf32>
      %c0_29 = arith.constant 0 : index
      %c0_30 = arith.constant 0 : index
      %46 = vector.load %arg8[%c0_29, %c0_30] : memref<128x1xf32, #tpu.memory_space<vmem>>, vector<128x1xf32>
      tpu.vector_store %arg8[%c0_29, %c0_30], %45 {strides = array<i32>} : memref<128x1xf32, #tpu.memory_space<vmem>>, vector<128x1xf32>,
      %cst_31 = arith.constant 0.000000e+00 : f32
      %47 = vector.broadcast %cst_31 : f32 to vector<128x1xf32>
      %c0_32 = arith.constant 0 : index
      %c0_33 = arith.constant 0 : index
      %48 = vector.load %arg9[%c0_32, %c0_33] : memref<128x1xf32, #tpu.memory_space<vmem>>, vector<128x1xf32>
      tpu.vector_store %arg9[%c0_32, %c0_33], %47 {strides = array<i32>} : memref<128x1xf32, #tpu.memory_space<vmem>>, vector<128x1xf32>,
      %c0_34 = arith.constant 0 : index
      %c0_35 = arith.constant 0 : index
      %49 = vector.load %arg2[%c0_34, %c0_35] : memref<128x64xbf16, #tpu.memory_space<vmem>>, vector<128x64xbf16>
      %c0_36 = arith.constant 0 : index
      %c0_37 = arith.constant 0 : index
      %50 = vector.load %arg3[%c0_36, %c0_37] : memref<64x128xbf16, #tpu.memory_space<vmem>>, vector<64x128xbf16>
      %cst_38 = arith.constant dense<0.000000e+00> : vector<128x128xf32>
      %51 = tpu.matmul %49, %50, %cst_38 {dimension_numbers = #tpu.dot_dimension_numbers<[1], [0], [0], [1], [0, 0, 1, 1], [], []>} : vector<128x64xbf16>, vector<64x128xbf16>, vector<128x128xf32> -> vector<128x128xf32>
      %52 = arith.truncf %51 : vector<128x128xf32> to vector<128x128xbf16>
      %c0_39 = arith.constant 0 : index
      %c0_40 = arith.constant 0 : index
      %53 = vector.load %arg10[%c0_39, %c0_40] : memref<128x128xbf16, #tpu.memory_space<vmem>>, vector<128x128xbf16>
      tpu.vector_store %arg10[%c0_39, %c0_40], %52 {strides = array<i32>} : memref<128x128xbf16, #tpu.memory_space<vmem>>, vector<128x128xbf16>,
    } else {
    }
    %c0 = arith.constant 0 : index
    %c0_1 = arith.constant 0 : index
    %3 = vector.load %arg10[%c0, %c0_1] : memref<128x128xbf16, #tpu.memory_space<vmem>>, vector<128x128xbf16>
    %c0_2 = arith.constant 0 : index
    %c0_3 = arith.constant 0 : index
    %4 = vector.load %arg4[%c0_2, %c0_3] : memref<128x128xbf16, #tpu.memory_space<vmem>>, vector<128x128xbf16>
    %cst = arith.constant dense<0.000000e+00> : vector<128x128xf32>
    %5 = tpu.matmul %3, %4, %cst {dimension_numbers = #tpu.dot_dimension_numbers<[1], [0], [0], [1], [0, 0, 1, 1], [], []>} : vector<128x128xbf16>, vector<128x128xbf16>, vector<128x128xf32> -> vector<128x128xf32>
    %c128_i32 = arith.constant 128 : i32
    %6 = arith.muli %arg1, %c128_i32 : i32
    %7 = tpu.iota {dimensions = array<i32: 1>} : vector<128x128xi32>
    %8 = vector.broadcast %6 : i32 to vector<128x128xi32>
    %9 = arith.addi %8, %7 : vector<128x128xi32>
    %c16_i32 = arith.constant 16 : i32
    %10 = vector.broadcast %c16_i32 : i32 to vector<128x128xi32>
    %11 = arith.cmpi slt, %9, %10 : vector<128x128xi32>
    %cst_4 = arith.constant -1.000000e+30 : f32
    %12 = vector.broadcast %cst_4 : f32 to vector<128x128xf32>
    %13 = arith.select %11, %5, %12 : vector<128x128xi1>, vector<128x128xf32>
    %c0_5 = arith.constant 0 : index
    %c0_6 = arith.constant 0 : index
    %14 = vector.load %arg5[%c0_5, %c0_6] : memref<128x1xi32, #tpu.memory_space<vmem>>, vector<128x1xi32>
    %c0_7 = arith.constant 0 : index
    %c0_8 = arith.constant 0 : index
    %15 = vector.load %arg9[%c0_7, %c0_8] : memref<128x1xf32, #tpu.memory_space<vmem>>, vector<128x1xf32>
    %16 = vector.broadcast %14 : vector<128x1xi32> to vector<128x128xi32>
    %17 = arith.cmpi eq, %9, %16 : vector<128x128xi32>
    %cst_9 = arith.constant 0.000000e+00 : f32
    %18 = vector.broadcast %cst_9 : f32 to vector<128x128xf32>
    %19 = arith.select %17, %13, %18 : vector<128x128xi1>, vector<128x128xf32>
    %cst_10 = arith.constant dense<0.000000e+00> : vector<128xf32>
    %20 = vector.multi_reduction <add>, %19, %cst_10 [1] : vector<128x128xf32> to vector<128xf32>
    %21 = vector.shape_cast %20 : vector<128xf32> to vector<128x1xf32>
    %22 = arith.addf %15, %21 : vector<128x1xf32>
    %c0_11 = arith.constant 0 : index
    %c0_12 = arith.constant 0 : index
    %23 = vector.load %arg9[%c0_11, %c0_12] : memref<128x1xf32, #tpu.memory_space<vmem>>, vector<128x1xf32>
    tpu.vector_store %arg9[%c0_11, %c0_12], %22 {strides = array<i32>} : memref<128x1xf32, #tpu.memory_space<vmem>>, vector<128x1xf32>,
    %c0_13 = arith.constant 0 : index
    %c0_14 = arith.constant 0 : index
    %24 = vector.load %arg7[%c0_13, %c0_14] : memref<128x1xf32, #tpu.memory_space<vmem>>, vector<128x1xf32>
    %cst_15 = arith.constant dense<0xFF800000> : vector<128xf32>
    %25 = vector.multi_reduction <maximumf>, %13, %cst_15 [1] : vector<128x128xf32> to vector<128xf32>
    %26 = vector.shape_cast %25 : vector<128xf32> to vector<128x1xf32>
    %27 = arith.maximumf %24, %26 : vector<128x1xf32>
    %c0_16 = arith.constant 0 : index
    %c0_17 = arith.constant 0 : index
    %28 = vector.load %arg8[%c0_16, %c0_17] : memref<128x1xf32, #tpu.memory_space<vmem>>, vector<128x1xf32>
    %29 = arith.subf %24, %27 : vector<128x1xf32>
    %30 = math.exp %29 : vector<128x1xf32>
    %31 = arith.mulf %28, %30 : vector<128x1xf32>
    %32 = vector.broadcast %27 : vector<128x1xf32> to vector<128x128xf32>
    %33 = arith.subf %13, %32 : vector<128x128xf32>
    %34 = math.exp %33 : vector<128x128xf32>
    %cst_18 = arith.constant dense<0.000000e+00> : vector<128xf32>
    %35 = vector.multi_reduction <add>, %34, %cst_18 [1] : vector<128x128xf32> to vector<128xf32>
    %36 = vector.shape_cast %35 : vector<128xf32> to vector<128x1xf32>
    %37 = arith.addf %31, %36 : vector<128x1xf32>
    %c0_19 = arith.constant 0 : index
    %c0_20 = arith.constant 0 : index
    %38 = vector.load %arg8[%c0_19, %c0_20] : memref<128x1xf32, #tpu.memory_space<vmem>>, vector<128x1xf32>
    tpu.vector_store %arg8[%c0_19, %c0_20], %37 {strides = array<i32>} : memref<128x1xf32, #tpu.memory_space<vmem>>, vector<128x1xf32>,
    %c0_21 = arith.constant 0 : index
    %c0_22 = arith.constant 0 : index
    %39 = vector.load %arg7[%c0_21, %c0_22] : memref<128x1xf32, #tpu.memory_space<vmem>>, vector<128x1xf32>
    tpu.vector_store %arg7[%c0_21, %c0_22], %27 {strides = array<i32>} : memref<128x1xf32, #tpu.memory_space<vmem>>, vector<128x1xf32>,
    %c0_i32_23 = arith.constant 0 : i32
    %40 = arith.cmpi eq, %arg1, %c0_i32_23 : i32
    %41 = arith.extui %40 : i1 to i32
    %c0_i32_24 = arith.constant 0 : i32
    %42 = arith.cmpi ne, %41, %c0_i32_24 : i32
    scf.if %42 {
      %c0_25 = arith.constant 0 : index
      %c0_26 = arith.constant 0 : index
      %43 = vector.load %arg7[%c0_25, %c0_26] : memref<128x1xf32, #tpu.memory_space<vmem>>, vector<128x1xf32>
      %c0_27 = arith.constant 0 : index
      %c0_28 = arith.constant 0 : index
      %44 = vector.load %arg8[%c0_27, %c0_28] : memref<128x1xf32, #tpu.memory_space<vmem>>, vector<128x1xf32>
      %45 = math.log %44 : vector<128x1xf32>
      %46 = arith.addf %43, %45 : vector<128x1xf32>
      %c0_29 = arith.constant 0 : index
      %c0_30 = arith.constant 0 : index
      %47 = vector.load %arg5[%c0_29, %c0_30] : memref<128x1xi32, #tpu.memory_space<vmem>>, vector<128x1xi32>
      %c0_i32_31 = arith.constant 0 : i32
      %48 = vector.broadcast %c0_i32_31 : i32 to vector<128x1xi32>
      %49 = arith.cmpi sge, %47, %48 : vector<128x1xi32>
      %c0_32 = arith.constant 0 : index
      %c0_33 = arith.constant 0 : index
      %50 = vector.load %arg9[%c0_32, %c0_33] : memref<128x1xf32, #tpu.memory_space<vmem>>, vector<128x1xf32>
      %51 = arith.subf %50, %46 : vector<128x1xf32>
      %cst_34 = arith.constant 0.000000e+00 : f32
      %52 = vector.broadcast %cst_34 : f32 to vector<128x1xf32>
      %53 = arith.select %49, %51, %52 : vector<128x1xi1>, vector<128x1xf32>
      %54 = vector.shape_cast %53 : vector<128x1xf32> to vector<128x1xf32>
      %55 = vector.broadcast %54 : vector<128x1xf32> to vector<128x128xf32>
      %c0_35 = arith.constant 0 : index
      %c0_36 = arith.constant 0 : index
      %56 = vector.load %arg6[%c0_35, %c0_36] : memref<128x128xf32, #tpu.memory_space<vmem>>, vector<128x128xf32>
      tpu.vector_store %arg6[%c0_35, %c0_36], %55 {strides = array<i32>} : memref<128x128xf32, #tpu.memory_space<vmem>>, vector<128x128xf32>,
    } else {
    }
    return
  }
  func.func @transform_0(%arg0: i32, %arg1: i32) -> (i32, i32) {
    %c0_i32 = arith.constant 0 : i32
    %c0_i32_0 = arith.constant 0 : i32
    return %arg0, %c0_i32 : i32, i32
  }
  func.func @transform_1(%arg0: i32, %arg1: i32) -> (i32, i32) {
    %c0_i32 = arith.constant 0 : i32
    %c0_i32_0 = arith.constant 0 : i32
    %c0_i32_1 = arith.constant 0 : i32
    return %c0_i32, %c0_i32_0 : i32, i32
  }
  func.func @transform_2(%arg0: i32, %arg1: i32) -> (i32, i32) {
    %c0_i32 = arith.constant 0 : i32
    %c0_i32_0 = arith.constant 0 : i32
    return %c0_i32, %arg1 : i32, i32
  }
  func.func @transform_3(%arg0: i32, %arg1: i32) -> (i32, i32) {
    %c0_i32 = arith.constant 0 : i32
    %c0_i32_0 = arith.constant 0 : i32
    return %arg0, %c0_i32 : i32, i32
  }
  func.func @transform_4(%arg0: i32, %arg1: i32) -> (i32, i32) {
    %c0_i32 = arith.constant 0 : i32
    %c0_i32_0 = arith.constant 0 : i32
    return %arg0, %c0_i32 : i32, i32
  }
}

module attributes {stable_mosaic.version = 11 : i64} {
  func.func @_head_kernel(%arg0: i32, %arg1: i32, %arg2: memref<128x64xbf16, #tpu.memory_space<vmem>>, %arg3: memref<64x128xbf16, #tpu.memory_space<vmem>>, %arg4: memref<128x1xi32, #tpu.memory_space<vmem>>, %arg5: memref<128x128xf32, #tpu.memory_space<vmem>>, %arg6: memref<128x1xf32, #tpu.memory_space<vmem>>, %arg7: memref<128x1xf32, #tpu.memory_space<vmem>>, %arg8: memref<128x1xf32, #tpu.memory_space<vmem>>) attributes {dimension_semantics = [#tpu.dimension_semantics<parallel>, #tpu.dimension_semantics<arbitrary>], iteration_bounds = array<i64: 1, 1>, scalar_prefetch = 0 : i64, scratch_operands = 3 : i64, tpu.core_type = #tpu.core_type<tc>, window_params = [{transform_indices = @transform_0, window_bounds = array<i64: 128, 64>}, {transform_indices = @transform_1, window_bounds = array<i64: 64, 128>}, {transform_indices = @transform_2, window_bounds = array<i64: 128, 1>}, {transform_indices = @transform_3, window_bounds = array<i64: 128, 128>}]} {
    %c0_i32 = arith.constant 0 : i32
    %0 = arith.cmpi eq, %arg1, %c0_i32 : i32
    %1 = arith.extui %0 : i1 to i32
    %c0_i32_0 = arith.constant 0 : i32
    %2 = arith.cmpi ne, %1, %c0_i32_0 : i32
    scf.if %2 {
      %cst_25 = arith.constant -1.000000e+30 : f32
      %43 = vector.broadcast %cst_25 : f32 to vector<128x1xf32>
      %c0_26 = arith.constant 0 : index
      %c0_27 = arith.constant 0 : index
      %44 = vector.load %arg6[%c0_26, %c0_27] : memref<128x1xf32, #tpu.memory_space<vmem>>, vector<128x1xf32>
      tpu.vector_store %arg6[%c0_26, %c0_27], %43 {strides = array<i32>} : memref<128x1xf32, #tpu.memory_space<vmem>>, vector<128x1xf32>,
      %cst_28 = arith.constant 0.000000e+00 : f32
      %45 = vector.broadcast %cst_28 : f32 to vector<128x1xf32>
      %c0_29 = arith.constant 0 : index
      %c0_30 = arith.constant 0 : index
      %46 = vector.load %arg7[%c0_29, %c0_30] : memref<128x1xf32, #tpu.memory_space<vmem>>, vector<128x1xf32>
      tpu.vector_store %arg7[%c0_29, %c0_30], %45 {strides = array<i32>} : memref<128x1xf32, #tpu.memory_space<vmem>>, vector<128x1xf32>,
      %cst_31 = arith.constant 0.000000e+00 : f32
      %47 = vector.broadcast %cst_31 : f32 to vector<128x1xf32>
      %c0_32 = arith.constant 0 : index
      %c0_33 = arith.constant 0 : index
      %48 = vector.load %arg8[%c0_32, %c0_33] : memref<128x1xf32, #tpu.memory_space<vmem>>, vector<128x1xf32>
      tpu.vector_store %arg8[%c0_32, %c0_33], %47 {strides = array<i32>} : memref<128x1xf32, #tpu.memory_space<vmem>>, vector<128x1xf32>,
    } else {
    }
    %c0 = arith.constant 0 : index
    %c0_1 = arith.constant 0 : index
    %3 = vector.load %arg2[%c0, %c0_1] : memref<128x64xbf16, #tpu.memory_space<vmem>>, vector<128x64xbf16>
    %c0_2 = arith.constant 0 : index
    %c0_3 = arith.constant 0 : index
    %4 = vector.load %arg3[%c0_2, %c0_3] : memref<64x128xbf16, #tpu.memory_space<vmem>>, vector<64x128xbf16>
    %cst = arith.constant dense<0.000000e+00> : vector<128x128xf32>
    %5 = tpu.matmul %3, %4, %cst {dimension_numbers = #tpu.dot_dimension_numbers<[1], [0], [0], [1], [0, 0, 1, 1], [], []>} : vector<128x64xbf16>, vector<64x128xbf16>, vector<128x128xf32> -> vector<128x128xf32>
    %c128_i32 = arith.constant 128 : i32
    %6 = arith.muli %arg1, %c128_i32 : i32
    %7 = tpu.iota {dimensions = array<i32: 1>} : vector<128x128xi32>
    %8 = vector.broadcast %6 : i32 to vector<128x128xi32>
    %9 = arith.addi %8, %7 : vector<128x128xi32>
    %c18_i32 = arith.constant 18 : i32
    %10 = vector.broadcast %c18_i32 : i32 to vector<128x128xi32>
    %11 = arith.cmpi slt, %9, %10 : vector<128x128xi32>
    %cst_4 = arith.constant -1.000000e+30 : f32
    %12 = vector.broadcast %cst_4 : f32 to vector<128x128xf32>
    %13 = arith.select %11, %5, %12 : vector<128x128xi1>, vector<128x128xf32>
    %c0_5 = arith.constant 0 : index
    %c0_6 = arith.constant 0 : index
    %14 = vector.load %arg4[%c0_5, %c0_6] : memref<128x1xi32, #tpu.memory_space<vmem>>, vector<128x1xi32>
    %c0_7 = arith.constant 0 : index
    %c0_8 = arith.constant 0 : index
    %15 = vector.load %arg8[%c0_7, %c0_8] : memref<128x1xf32, #tpu.memory_space<vmem>>, vector<128x1xf32>
    %16 = vector.broadcast %14 : vector<128x1xi32> to vector<128x128xi32>
    %17 = arith.cmpi eq, %9, %16 : vector<128x128xi32>
    %cst_9 = arith.constant 0.000000e+00 : f32
    %18 = vector.broadcast %cst_9 : f32 to vector<128x128xf32>
    %19 = arith.select %17, %13, %18 : vector<128x128xi1>, vector<128x128xf32>
    %cst_10 = arith.constant dense<0.000000e+00> : vector<128xf32>
    %20 = vector.multi_reduction <add>, %19, %cst_10 [1] : vector<128x128xf32> to vector<128xf32>
    %21 = vector.shape_cast %20 : vector<128xf32> to vector<128x1xf32>
    %22 = arith.addf %15, %21 : vector<128x1xf32>
    %c0_11 = arith.constant 0 : index
    %c0_12 = arith.constant 0 : index
    %23 = vector.load %arg8[%c0_11, %c0_12] : memref<128x1xf32, #tpu.memory_space<vmem>>, vector<128x1xf32>
    tpu.vector_store %arg8[%c0_11, %c0_12], %22 {strides = array<i32>} : memref<128x1xf32, #tpu.memory_space<vmem>>, vector<128x1xf32>,
    %c0_13 = arith.constant 0 : index
    %c0_14 = arith.constant 0 : index
    %24 = vector.load %arg6[%c0_13, %c0_14] : memref<128x1xf32, #tpu.memory_space<vmem>>, vector<128x1xf32>
    %cst_15 = arith.constant dense<0xFF800000> : vector<128xf32>
    %25 = vector.multi_reduction <maximumf>, %13, %cst_15 [1] : vector<128x128xf32> to vector<128xf32>
    %26 = vector.shape_cast %25 : vector<128xf32> to vector<128x1xf32>
    %27 = arith.maximumf %24, %26 : vector<128x1xf32>
    %c0_16 = arith.constant 0 : index
    %c0_17 = arith.constant 0 : index
    %28 = vector.load %arg7[%c0_16, %c0_17] : memref<128x1xf32, #tpu.memory_space<vmem>>, vector<128x1xf32>
    %29 = arith.subf %24, %27 : vector<128x1xf32>
    %30 = math.exp %29 : vector<128x1xf32>
    %31 = arith.mulf %28, %30 : vector<128x1xf32>
    %32 = vector.broadcast %27 : vector<128x1xf32> to vector<128x128xf32>
    %33 = arith.subf %13, %32 : vector<128x128xf32>
    %34 = math.exp %33 : vector<128x128xf32>
    %cst_18 = arith.constant dense<0.000000e+00> : vector<128xf32>
    %35 = vector.multi_reduction <add>, %34, %cst_18 [1] : vector<128x128xf32> to vector<128xf32>
    %36 = vector.shape_cast %35 : vector<128xf32> to vector<128x1xf32>
    %37 = arith.addf %31, %36 : vector<128x1xf32>
    %c0_19 = arith.constant 0 : index
    %c0_20 = arith.constant 0 : index
    %38 = vector.load %arg7[%c0_19, %c0_20] : memref<128x1xf32, #tpu.memory_space<vmem>>, vector<128x1xf32>
    tpu.vector_store %arg7[%c0_19, %c0_20], %37 {strides = array<i32>} : memref<128x1xf32, #tpu.memory_space<vmem>>, vector<128x1xf32>,
    %c0_21 = arith.constant 0 : index
    %c0_22 = arith.constant 0 : index
    %39 = vector.load %arg6[%c0_21, %c0_22] : memref<128x1xf32, #tpu.memory_space<vmem>>, vector<128x1xf32>
    tpu.vector_store %arg6[%c0_21, %c0_22], %27 {strides = array<i32>} : memref<128x1xf32, #tpu.memory_space<vmem>>, vector<128x1xf32>,
    %c0_i32_23 = arith.constant 0 : i32
    %40 = arith.cmpi eq, %arg1, %c0_i32_23 : i32
    %41 = arith.extui %40 : i1 to i32
    %c0_i32_24 = arith.constant 0 : i32
    %42 = arith.cmpi ne, %41, %c0_i32_24 : i32
    scf.if %42 {
      %c0_25 = arith.constant 0 : index
      %c0_26 = arith.constant 0 : index
      %43 = vector.load %arg6[%c0_25, %c0_26] : memref<128x1xf32, #tpu.memory_space<vmem>>, vector<128x1xf32>
      %c0_27 = arith.constant 0 : index
      %c0_28 = arith.constant 0 : index
      %44 = vector.load %arg7[%c0_27, %c0_28] : memref<128x1xf32, #tpu.memory_space<vmem>>, vector<128x1xf32>
      %45 = math.log %44 : vector<128x1xf32>
      %46 = arith.addf %43, %45 : vector<128x1xf32>
      %c0_29 = arith.constant 0 : index
      %c0_30 = arith.constant 0 : index
      %47 = vector.load %arg8[%c0_29, %c0_30] : memref<128x1xf32, #tpu.memory_space<vmem>>, vector<128x1xf32>
      %48 = arith.subf %47, %46 : vector<128x1xf32>
      %49 = vector.shape_cast %48 : vector<128x1xf32> to vector<128x1xf32>
      %50 = vector.broadcast %49 : vector<128x1xf32> to vector<128x128xf32>
      %c0_31 = arith.constant 0 : index
      %c0_32 = arith.constant 0 : index
      %51 = vector.load %arg5[%c0_31, %c0_32] : memref<128x128xf32, #tpu.memory_space<vmem>>, vector<128x128xf32>
      tpu.vector_store %arg5[%c0_31, %c0_32], %50 {strides = array<i32>} : memref<128x128xf32, #tpu.memory_space<vmem>>, vector<128x128xf32>,
    } else {
    }
    return
  }
  func.func @transform_0(%arg0: i32, %arg1: i32) -> (i32, i32) {
    %c0_i32 = arith.constant 0 : i32
    %c0_i32_0 = arith.constant 0 : i32
    return %arg0, %c0_i32 : i32, i32
  }
  func.func @transform_1(%arg0: i32, %arg1: i32) -> (i32, i32) {
    %c0_i32 = arith.constant 0 : i32
    %c0_i32_0 = arith.constant 0 : i32
    return %c0_i32, %arg1 : i32, i32
  }
  func.func @transform_2(%arg0: i32, %arg1: i32) -> (i32, i32) {
    %c0_i32 = arith.constant 0 : i32
    %c0_i32_0 = arith.constant 0 : i32
    return %arg0, %c0_i32 : i32, i32
  }
  func.func @transform_3(%arg0: i32, %arg1: i32) -> (i32, i32) {
    %c0_i32 = arith.constant 0 : i32
    %c0_i32_0 = arith.constant 0 : i32
    return %arg0, %c0_i32 : i32, i32
  }
}

</mosaic_0001>

<llo_original>
// kernel: forward.3
$region0: #{forward.3}
  #allocation0 [shape = 'u32[]', space=smem, size = 0x4, offset = 0x4, fixed_abs, tag = 'smem constant byte address 0x4 - core index']
  #allocation1 [shape = 'u32[144,128]{1,0:T(1,128)}', space=vmem, size = 0x12000, scoped, tag = 'internal scratch']
  #allocation2 [shape = 'f32[128,1]{1,0:T(8,128)}', space=vmem, size = 0x10000, scoped, tag = 'scratch operand']
  #allocation3 [shape = 'f32[128,1]{1,0:T(8,128)}', space=vmem, size = 0x10000, scoped, tag = 'scratch operand']
  #allocation4 [shape = 'f32[128,1]{1,0:T(8,128)}', space=vmem, size = 0x10000, scoped, tag = 'scratch operand']
  %s0 = inlined_call_operand.vmem [shape: bf16[128,64], index: 0, kind: input, shape index: {}]
  %s1 = inlined_call_operand.vmem [shape: bf16[64,128], index: 1, kind: input, shape index: {}]
  %s2 = inlined_call_operand.vmem [shape: s32[128,1], index: 2, kind: input, shape index: {}]
  %s3 = inlined_call_operand.vmem [shape: f32[128,128], index: 3, kind: output, shape index: {}]
  %s4 = sld [smem:[#allocation0]]
  $region30: #{forward.3} parent=0
    _
  %s6 = ssub.s32 1, %s4
  %s7 = scalar_select 0, %s6, %s4
  // Predicated region
  $region2: #{forward.3} parent=0 // pred_check
    _
  $region3: #{forward.3} parent=0 // pred_check_branch
    %9 = sbr.rel (0) target = $region5
  $region4: #{forward.3} parent=0 // pred_region
    _
  $region5: #{forward.3} parent=0 // pred_fallthru
    _
  // Predicated region
  $region6: #{forward.3} parent=0 // pred_check
    _
  $region7: #{forward.3} parent=0 // pred_check_branch
    %11 = sbr.rel (0) target = $region9
  $region8: #{forward.3} parent=0 // pred_region
    _
  $region9: #{forward.3} parent=0 // pred_fallthru
    _
  // Predicated region
  $region10: #{forward.3} parent=0 // pred_check
    _
  $region11: #{forward.3} parent=0 // pred_check_branch
    %13 = sbr.rel (0) target = $region13
  $region12: #{forward.3} parent=0 // pred_region
    _
  $region13: #{forward.3} parent=0 // pred_fallthru
    _
  %p15 = scmp.eq.s32.totalorder 0, 0
  // Predicated region
  $region14: #{forward.3} parent=0 // pred_check
    %p16 = pneg %p15
  $region15: #{forward.3} parent=0 // pred_check_branch
    %18 = sbr.rel (%p16) target = $region17
  $region16: #{forward.3} parent=0 // pred_region
    %vm19 = vcmask 7168
    %20 = vst.msk [vmem:[#allocation2] sm:$0xff] %vm19, -1e+30
    %21 = vst.msk [vmem:[#allocation2 + $0x8] sm:$0xff] %vm19, -1e+30
    %22 = vst.msk [vmem:[#allocation2 + $0x10] sm:$0xff] %vm19, -1e+30
    %23 = vst.msk [vmem:[#allocation2 + $0x18] sm:$0xff] %vm19, -1e+30
    %24 = vst.msk [vmem:[#allocation2 + $0x20] sm:$0xff] %vm19, -1e+30
    %25 = vst.msk [vmem:[#allocation2 + $0x28] sm:$0xff] %vm19, -1e+30
    %26 = vst.msk [vmem:[#allocation2 + $0x30] sm:$0xff] %vm19, -1e+30
    %27 = vst.msk [vmem:[#allocation2 + $0x38] sm:$0xff] %vm19, -1e+30
    %28 = vst.msk [vmem:[#allocation2 + $0x40] sm:$0xff] %vm19, -1e+30
    %29 = vst.msk [vmem:[#allocation2 + $0x48] sm:$0xff] %vm19, -1e+30
    %30 = vst.msk [vmem:[#allocation2 + $0x50] sm:$0xff] %vm19, -1e+30
    %31 = vst.msk [vmem:[#allocation2 + $0x58] sm:$0xff] %vm19, -1e+30
    %32 = vst.msk [vmem:[#allocation2 + $0x60] sm:$0xff] %vm19, -1e+30
    %33 = vst.msk [vmem:[#allocation2 + $0x68] sm:$0xff] %vm19, -1e+30
    %34 = vst.msk [vmem:[#allocation2 + $0x70] sm:$0xff] %vm19, -1e+30
    %35 = vst.msk [vmem:[#allocation2 + $0x78] sm:$0xff] %vm19, -1e+30
    %36 = vst.msk [vmem:[#allocation3] sm:$0xff] %vm19, 0.0
    %37 = vst.msk [vmem:[#allocation3 + $0x8] sm:$0xff] %vm19, 0.0
    %38 = vst.msk [vmem:[#allocation3 + $0x10] sm:$0xff] %vm19, 0.0
    %39 = vst.msk [vmem:[#allocation3 + $0x18] sm:$0xff] %vm19, 0.0
    %40 = vst.msk [vmem:[#allocation3 + $0x20] sm:$0xff] %vm19, 0.0
    %41 = vst.msk [vmem:[#allocation3 + $0x28] sm:$0xff] %vm19, 0.0
    %42 = vst.msk [vmem:[#allocation3 + $0x30] sm:$0xff] %vm19, 0.0
    %43 = vst.msk [vmem:[#allocation3 + $0x38] sm:$0xff] %vm19, 0.0
    %44 = vst.msk [vmem:[#allocation3 + $0x40] sm:$0xff] %vm19, 0.0
    %45 = vst.msk [vmem:[#allocation3 + $0x48] sm:$0xff] %vm19, 0.0
    %46 = vst.msk [vmem:[#allocation3 + $0x50] sm:$0xff] %vm19, 0.0
    %47 = vst.msk [vmem:[#allocation3 + $0x58] sm:$0xff] %vm19, 0.0
    %48 = vst.msk [vmem:[#allocation3 + $0x60] sm:$0xff] %vm19, 0.0
    %49 = vst.msk [vmem:[#allocation3 + $0x68] sm:$0xff] %vm19, 0.0
    %50 = vst.msk [vmem:[#allocation3 + $0x70] sm:$0xff] %vm19, 0.0
    %51 = vst.msk [vmem:[#allocation3 + $0x78] sm:$0xff] %vm19, 0.0
    %52 = vst.msk [vmem:[#allocation4] sm:$0xff] %vm19, 0.0
    %53 = vst.msk [vmem:[#allocation4 + $0x8] sm:$0xff] %vm19, 0.0
    %54 = vst.msk [vmem:[#allocation4 + $0x10] sm:$0xff] %vm19, 0.0
    %55 = vst.msk [vmem:[#allocation4 + $0x18] sm:$0xff] %vm19, 0.0
    %56 = vst.msk [vmem:[#allocation4 + $0x20] sm:$0xff] %vm19, 0.0
    %57 = vst.msk [vmem:[#allocation4 + $0x28] sm:$0xff] %vm19, 0.0
    %58 = vst.msk [vmem:[#allocation4 + $0x30] sm:$0xff] %vm19, 0.0
    %59 = vst.msk [vmem:[#allocation4 + $0x38] sm:$0xff] %vm19, 0.0
    %60 = vst.msk [vmem:[#allocation4 + $0x40] sm:$0xff] %vm19, 0.0
    %61 = vst.msk [vmem:[#allocation4 + $0x48] sm:$0xff] %vm19, 0.0
    %62 = vst.msk [vmem:[#allocation4 + $0x50] sm:$0xff] %vm19, 0.0
    %63 = vst.msk [vmem:[#allocation4 + $0x58] sm:$0xff] %vm19, 0.0
    %64 = vst.msk [vmem:[#allocation4 + $0x60] sm:$0xff] %vm19, 0.0
    %65 = vst.msk [vmem:[#allocation4 + $0x68] sm:$0xff] %vm19, 0.0
    %66 = vst.msk [vmem:[#allocation4 + $0x70] sm:$0xff] %vm19, 0.0
    %67 = vst.msk [vmem:[#allocation4 + $0x78] sm:$0xff] %vm19, 0.0
  $region17: #{forward.3} parent=0 // pred_fallthru
    _
  %v68 = vld [vmem:[%s0] sm:$0xf]
  %v69 = vld [vmem:[%s0 + $0x4] sm:$0xf]
  %v70 = vld [vmem:[%s0 + $0x8] sm:$0xf]
  %v71 = vld [vmem:[%s0 + $0xc] sm:$0xf]
  %v72 = vld [vmem:[%s0 + $0x10] sm:$0xf]
  %v73 = vld [vmem:[%s0 + $0x14] sm:$0xf]
  %v74 = vld [vmem:[%s0 + $0x18] sm:$0xf]
  %v75 = vld [vmem:[%s0 + $0x1c] sm:$0xf]
  %v76 = vld [vmem:[%s0 + $0x20] sm:$0xf]
  %v77 = vld [vmem:[%s0 + $0x24] sm:$0xf]
  %v78 = vld [vmem:[%s0 + $0x28] sm:$0xf]
  %v79 = vld [vmem:[%s0 + $0x2c] sm:$0xf]
  %v80 = vld [vmem:[%s0 + $0x30] sm:$0xf]
  %v81 = vld [vmem:[%s0 + $0x34] sm:$0xf]
  %v82 = vld [vmem:[%s0 + $0x38] sm:$0xf]
  %v83 = vld [vmem:[%s0 + $0x3c] sm:$0xf]
  %v84 = vld [vmem:[%s1] sm:$0xf]
  %v85 = vld [vmem:[%s1 + $0x4] sm:$0xf]
  %v86 = vld [vmem:[%s1 + $0x8] sm:$0xf]
  %v87 = vld [vmem:[%s1 + $0xc] sm:$0xf]
  %v88 = vld [vmem:[%s1 + $0x10] sm:$0xf]
  %v89 = vld [vmem:[%s1 + $0x14] sm:$0xf]
  %v90 = vld [vmem:[%s1 + $0x18] sm:$0xf]
  %v91 = vld [vmem:[%s1 + $0x1c] sm:$0xf]
  %v108 = vunpack.c.l.b16 %v68
  %v109 = vunpack.c.l.b16 %v69
  %v110 = vunpack.c.l.b16 %v70
  %v111 = vunpack.c.l.b16 %v71
  %v112 = vunpack.c.l.b16 %v72
  %v113 = vunpack.c.l.b16 %v73
  %v114 = vunpack.c.l.b16 %v74
  %v115 = vunpack.c.l.b16 %v75
  %v116 = vunpack.c.l.b16 %v76
  %v117 = vunpack.c.l.b16 %v77
  %v118 = vunpack.c.l.b16 %v78
  %v119 = vunpack.c.l.b16 %v79
  %v120 = vunpack.c.l.b16 %v80
  %v121 = vunpack.c.l.b16 %v81
  %v122 = vunpack.c.l.b16 %v82
  %v123 = vunpack.c.l.b16 %v83
  %v124 = vpack.c.b16 %v109, %v108
  %v125 = vpack.c.b16 %v111, %v110
  %v126 = vpack.c.b16 %v113, %v112
  %v127 = vpack.c.b16 %v115, %v114
  %v128 = vpack.c.b16 %v117, %v116
  %v129 = vpack.c.b16 %v119, %v118
  %v130 = vpack.c.b16 %v121, %v120
  %v131 = vpack.c.b16 %v123, %v122
  %v140 = vunpack.c.l.b16 %v84
  %v141 = vunpack.c.l.b16 %v85
  %v142 = vunpack.c.l.b16 %v86
  %v143 = vunpack.c.l.b16 %v87
  %v144 = vunpack.c.l.b16 %v88
  %v145 = vunpack.c.l.b16 %v89
  %v146 = vunpack.c.l.b16 %v90
  %v147 = vunpack.c.l.b16 %v91
  %v148 = vpack.c.b16 %v141, %v140
  %v149 = vpack.c.b16 %v143, %v142
  %v150 = vpack.c.b16 %v145, %v144
  %v151 = vpack.c.b16 %v147, %v146
  %vm156 = vcmask 523264
  %v158 = vsel %vm156, %v124, 0
  %v161 = vsel %vm156, %v125, 0
  %v164 = vsel %vm156, %v126, 0
  %v167 = vsel %vm156, %v127, 0
  %v170 = vsel %vm156, %v128, 0
  %v173 = vsel %vm156, %v129, 0
  %v176 = vsel %vm156, %v130, 0
  %v179 = vsel %vm156, %v131, 0
  %181 = vmatprep.subr.bf16.mxu0 0
  %182 = vmatpush1.bf16.msra.mxu0 %v148
  %183 = vmatprep.subr.bf16.mxu0 0
  %184 = vmatpush1.bf16.msra.mxu0 %v149
  %185 = vmatprep.subr.bf16.mxu0 0
  %186 = vmatpush1.bf16.msra.mxu0 %v150
  %187 = vmatprep.subr.bf16.mxu0 0
  %188 = vmatpush1.bf16.msra.mxu0 %v151
  %189 = vmatprep.subr.bf16.mxu0 0
  %190 = vmatpush1.bf16.msra.mxu0 0
  %191 = vmatprep.subr.bf16.mxu0 0
  %192 = vmatpush1.bf16.msra.mxu0 0
  %193 = vmatprep.subr.bf16.mxu0 0
  %194 = vmatpush1.bf16.msra.mxu0 0
  %195 = vmatprep.subr.bf16.mxu0 0
  %196 = vmatpush1.bf16.msra.mxu0 0
  %197 = vmatprep.subr.bf16.mxu0 0
  %198 = vmatpush1.bf16.msra.mxu0 0
  %199 = vmatprep.subr.bf16.mxu0 0
  %200 = vmatpush1.bf16.msra.mxu0 0
  %201 = vmatprep.subr.bf16.mxu0 0
  %202 = vmatpush1.bf16.msra.mxu0 0
  %203 = vmatprep.subr.bf16.mxu0 0
  %204 = vmatpush1.bf16.msra.mxu0 0
  %205 = vmatprep.subr.bf16.mxu0 0
  %206 = vmatpush1.bf16.msra.mxu0 0
  %207 = vmatprep.subr.bf16.mxu0 0
  %208 = vmatpush1.bf16.msra.mxu0 0
  %209 = vmatprep.subr.bf16.mxu0 0
  %210 = vmatpush1.bf16.msra.mxu0 0
  %211 = vmatprep.subr.bf16.mxu0 0
  %212 = vmatpush1.bf16.msra.mxu0 0
  %213 = vmatprep.mubr.bf16.mxu0 0
  %214 = vmatmul.mubr.bf16.gmra.mrb[0].mxu0 %v158
  %v215 = vpop.f32.mrb[0].mxu0
  %v216 = vadd.f32 0.0, %v215
  %v217 = vpop.f32.mrb[0].mxu0
  %v218 = vpop.f32.mrb[0].mxu0
  %v219 = vadd.f32 0.0, %v218
  %v220 = vpop.f32.mrb[0].mxu0
  %221 = vmatprep.mubr.bf16.mxu0 0
  %222 = vmatmul.mubr.bf16.gmra.mrb[0].mxu0 %v161
  %v223 = vpop.f32.mrb[0].mxu0
  %v224 = vadd.f32 0.0, %v223
  %v225 = vpop.f32.mrb[0].mxu0
  %v226 = vpop.f32.mrb[0].mxu0
  %v227 = vadd.f32 0.0, %v226
  %v228 = vpop.f32.mrb[0].mxu0
  %229 = vmatprep.mubr.bf16.mxu0 0
  %230 = vmatmul.mubr.bf16.gmra.mrb[0].mxu0 %v164
  %v231 = vpop.f32.mrb[0].mxu0
  %v232 = vadd.f32 0.0, %v231
  %v233 = vpop.f32.mrb[0].mxu0
  %v234 = vpop.f32.mrb[0].mxu0
  %v235 = vadd.f32 0.0, %v234
  %v236 = vpop.f32.mrb[0].mxu0
  %237 = vmatprep.mubr.bf16.mxu0 0
  %238 = vmatmul.mubr.bf16.gmra.mrb[0].mxu0 %v167
  %v239 = vpop.f32.mrb[0].mxu0
  %v240 = vadd.f32 0.0, %v239
  %v241 = vpop.f32.mrb[0].mxu0
  %v242 = vpop.f32.mrb[0].mxu0
  %v243 = vadd.f32 0.0, %v242
  %v244 = vpop.f32.mrb[0].mxu0
  %245 = vmatprep.mubr.bf16.mxu0 0
  %246 = vmatmul.mubr.bf16.gmra.mrb[0].mxu0 %v170
  %v247 = vpop.f32.mrb[0].mxu0
  %v248 = vadd.f32 0.0, %v247
  %v249 = vpop.f32.mrb[0].mxu0
  %v250 = vpop.f32.mrb[0].mxu0
  %v251 = vadd.f32 0.0, %v250
  %v252 = vpop.f32.mrb[0].mxu0
  %253 = vmatprep.mubr.bf16.mxu0 0
  %254 = vmatmul.mubr.bf16.gmra.mrb[0].mxu0 %v173
  %v255 = vpop.f32.mrb[0].mxu0
  %v256 = vadd.f32 0.0, %v255
  %v257 = vpop.f32.mrb[0].mxu0
  %v258 = vpop.f32.mrb[0].mxu0
  %v259 = vadd.f32 0.0, %v258
  %v260 = vpop.f32.mrb[0].mxu0
  %261 = vmatprep.mubr.bf16.mxu0 0
  %262 = vmatmul.mubr.bf16.gmra.mrb[0].mxu0 %v176
  %v263 = vpop.f32.mrb[0].mxu0
  %v264 = vadd.f32 0.0, %v263
  %v265 = vpop.f32.mrb[0].mxu0
  %v266 = vpop.f32.mrb[0].mxu0
  %v267 = vadd.f32 0.0, %v266
  %v268 = vpop.f32.mrb[0].mxu0
  %269 = vmatprep.mubr.bf16.mxu0 0
  %270 = vmatmul.mubr.bf16.gmra.mrb[0].mxu0 %v179
  %v271 = vpop.f32.mrb[0].mxu0
  %v272 = vadd.f32 0.0, %v271
  %v273 = vpop.f32.mrb[0].mxu0
  %v274 = vpop.f32.mrb[0].mxu0
  %v275 = vadd.f32 0.0, %v274
  %v276 = vpop.f32.mrb[0].mxu0
  %277 = vdwg.mxu0
  %s278 = smul.u32 0, 128
  %v279 = vlaneseq
  %v280 = vand.u32 %v279, 127
  %v281 = vstv %s278
  %v282 = vadd.s32 %v281, %v280
  %vm283 = vcmp.lt.s32.totalorder %v282, 18
  %v284 = vsel %vm283, %v216, -1e+30
  %v285 = vsel %vm283, %v219, -1e+30
  %v286 = vsel %vm283, %v224, -1e+30
  %v287 = vsel %vm283, %v227, -1e+30
  %v288 = vsel %vm283, %v232, -1e+30
  %v289 = vsel %vm283, %v235, -1e+30
  %v290 = vsel %vm283, %v240, -1e+30
  %v291 = vsel %vm283, %v243, -1e+30
  %v292 = vsel %vm283, %v248, -1e+30
  %v293 = vsel %vm283, %v251, -1e+30
  %v294 = vsel %vm283, %v256, -1e+30
  %v295 = vsel %vm283, %v259, -1e+30
  %v296 = vsel %vm283, %v264, -1e+30
  %v297 = vsel %vm283, %v267, -1e+30
  %v298 = vsel %vm283, %v272, -1e+30
  %v299 = vsel %vm283, %v275, -1e+30
  %v300 = vld [vmem:[%s2] sm:$0xff]
  %v301 = vld [vmem:[%s2 + $0x8] sm:$0xff]
  %v302 = vld [vmem:[%s2 + $0x10] sm:$0xff]
  %v303 = vld [vmem:[%s2 + $0x18] sm:$0xff]
  %v304 = vld [vmem:[%s2 + $0x20] sm:$0xff]
  %v305 = vld [vmem:[%s2 + $0x28] sm:$0xff]
  %v306 = vld [vmem:[%s2 + $0x30] sm:$0xff]
  %v307 = vld [vmem:[%s2 + $0x38] sm:$0xff]
  %v308 = vld [vmem:[%s2 + $0x40] sm:$0xff]
  %v309 = vld [vmem:[%s2 + $0x48] sm:$0xff]
  %v310 = vld [vmem:[%s2 + $0x50] sm:$0xff]
  %v311 = vld [vmem:[%s2 + $0x58] sm:$0xff]
  %v312 = vld [vmem:[%s2 + $0x60] sm:$0xff]
  %v313 = vld [vmem:[%s2 + $0x68] sm:$0xff]
  %v314 = vld [vmem:[%s2 + $0x70] sm:$0xff]
  %v315 = vld [vmem:[%s2 + $0x78] sm:$0xff]
  %v316 = vld [vmem:[#allocation4] sm:$0xff]
  %v317 = vld [vmem:[#allocation4 + $0x8] sm:$0xff]
  %v318 = vld [vmem:[#allocation4 + $0x10] sm:$0xff]
  %v319 = vld [vmem:[#allocation4 + $0x18] sm:$0xff]
  %v320 = vld [vmem:[#allocation4 + $0x20] sm:$0xff]
  %v321 = vld [vmem:[#allocation4 + $0x28] sm:$0xff]
  %v322 = vld [vmem:[#allocation4 + $0x30] sm:$0xff]
  %v323 = vld [vmem:[#allocation4 + $0x38] sm:$0xff]
  %v324 = vld [vmem:[#allocation4 + $0x40] sm:$0xff]
  %v325 = vld [vmem:[#allocation4 + $0x48] sm:$0xff]
  %v326 = vld [vmem:[#allocation4 + $0x50] sm:$0xff]
  %v327 = vld [vmem:[#allocation4 + $0x58] sm:$0xff]
  %v328 = vld [vmem:[#allocation4 + $0x60] sm:$0xff]
  %v329 = vld [vmem:[#allocation4 + $0x68] sm:$0xff]
  %v330 = vld [vmem:[#allocation4 + $0x70] sm:$0xff]
  %v331 = vld [vmem:[#allocation4 + $0x78] sm:$0xff]
  %332 = vset.pattern.permute.xlu0 0
  %333 = vperm.xlu0 %332, %v300
  %v334 = vpop.permute.xlu0 %333
  %335 = vset.pattern.permute.xlu0 0
  %336 = vperm.xlu0 %335, %v301
  %v337 = vpop.permute.xlu0 %336
  %338 = vset.pattern.permute.xlu0 0
  %339 = vperm.xlu0 %338, %v302
  %v340 = vpop.permute.xlu0 %339
  %341 = vset.pattern.permute.xlu0 0
  %342 = vperm.xlu0 %341, %v303
  %v343 = vpop.permute.xlu0 %342
  %344 = vset.pattern.permute.xlu0 0
  %345 = vperm.xlu0 %344, %v304
  %v346 = vpop.permute.xlu0 %345
  %347 = vset.pattern.permute.xlu0 0
  %348 = vperm.xlu0 %347, %v305
  %v349 = vpop.permute.xlu0 %348
  %350 = vset.pattern.permute.xlu0 0
  %351 = vperm.xlu0 %350, %v306
  %v352 = vpop.permute.xlu0 %351
  %353 = vset.pattern.permute.xlu0 0
  %354 = vperm.xlu0 %353, %v307
  %v355 = vpop.permute.xlu0 %354
  %356 = vset.pattern.permute.xlu0 0
  %357 = vperm.xlu0 %356, %v308
  %v358 = vpop.permute.xlu0 %357
  %359 = vset.pattern.permute.xlu0 0
  %360 = vperm.xlu0 %359, %v309
  %v361 = vpop.permute.xlu0 %360
  %362 = vset.pattern.permute.xlu0 0
  %363 = vperm.xlu0 %362, %v310
  %v364 = vpop.permute.xlu0 %363
  %365 = vset.pattern.permute.xlu0 0
  %366 = vperm.xlu0 %365, %v311
  %v367 = vpop.permute.xlu0 %366
  %368 = vset.pattern.permute.xlu0 0
  %369 = vperm.xlu0 %368, %v312
  %v370 = vpop.permute.xlu0 %369
  %371 = vset.pattern.permute.xlu0 0
  %372 = vperm.xlu0 %371, %v313
  %v373 = vpop.permute.xlu0 %372
  %374 = vset.pattern.permute.xlu0 0
  %375 = vperm.xlu0 %374, %v314
  %v376 = vpop.permute.xlu0 %375
  %377 = vset.pattern.permute.xlu0 0
  %378 = vperm.xlu0 %377, %v315
  %v379 = vpop.permute.xlu0 %378
  %vm380 = vcmp.eq.s32.totalorder %v282, %v334
  %vm381 = vcmp.eq.s32.totalorder %v282, %v337
  %vm382 = vcmp.eq.s32.totalorder %v282, %v340
  %vm383 = vcmp.eq.s32.totalorder %v282, %v343
  %vm384 = vcmp.eq.s32.totalorder %v282, %v346
  %vm385 = vcmp.eq.s32.totalorder %v282, %v349
  %vm386 = vcmp.eq.s32.totalorder %v282, %v352
  %vm387 = vcmp.eq.s32.totalorder %v282, %v355
  %vm388 = vcmp.eq.s32.totalorder %v282, %v358
  %vm389 = vcmp.eq.s32.totalorder %v282, %v361
  %vm390 = vcmp.eq.s32.totalorder %v282, %v364
  %vm391 = vcmp.eq.s32.totalorder %v282, %v367
  %vm392 = vcmp.eq.s32.totalorder %v282, %v370
  %vm393 = vcmp.eq.s32.totalorder %v282, %v373
  %vm394 = vcmp.eq.s32.totalorder %v282, %v376
  %vm395 = vcmp.eq.s32.totalorder %v282, %v379
  %v396 = vsel %vm380, %v284, 0.0
  %v397 = vsel %vm381, %v285, 0.0
  %v398 = vsel %vm382, %v286, 0.0
  %v399 = vsel %vm383, %v287, 0.0
  %v400 = vsel %vm384, %v288, 0.0
  %v401 = vsel %vm385, %v289, 0.0
  %v402 = vsel %vm386, %v290, 0.0
  %v403 = vsel %vm387, %v291, 0.0
  %v404 = vsel %vm388, %v292, 0.0
  %v405 = vsel %vm389, %v293, 0.0
  %v406 = vsel %vm390, %v294, 0.0
  %v407 = vsel %vm391, %v295, 0.0
  %v408 = vsel %vm392, %v296, 0.0
  %v409 = vsel %vm393, %v297, 0.0
  %v410 = vsel %vm394, %v298, 0.0
  %v411 = vsel %vm395, %v299, 0.0
  %412 = vadd.xlane.f32.xlu0 %v396
  %v413 = vpop.xlane.xlu0 %412
  %414 = vadd.xlane.f32.xlu0 %v397
  %v415 = vpop.xlane.xlu0 %414
  %416 = vadd.xlane.f32.xlu0 %v398
  %v417 = vpop.xlane.xlu0 %416
  %418 = vadd.xlane.f32.xlu0 %v399
  %v419 = vpop.xlane.xlu0 %418
  %420 = vadd.xlane.f32.xlu0 %v400
  %v421 = vpop.xlane.xlu0 %420
  %422 = vadd.xlane.f32.xlu0 %v401
  %v423 = vpop.xlane.xlu0 %422
  %424 = vadd.xlane.f32.xlu0 %v402
  %v425 = vpop.xlane.xlu0 %424
  %426 = vadd.xlane.f32.xlu0 %v403
  %v427 = vpop.xlane.xlu0 %426
  %428 = vadd.xlane.f32.xlu0 %v404
  %v429 = vpop.xlane.xlu0 %428
  %430 = vadd.xlane.f32.xlu0 %v405
  %v431 = vpop.xlane.xlu0 %430
  %432 = vadd.xlane.f32.xlu0 %v406
  %v433 = vpop.xlane.xlu0 %432
  %434 = vadd.xlane.f32.xlu0 %v407
  %v435 = vpop.xlane.xlu0 %434
  %436 = vadd.xlane.f32.xlu0 %v408
  %v437 = vpop.xlane.xlu0 %436
  %438 = vadd.xlane.f32.xlu0 %v409
  %v439 = vpop.xlane.xlu0 %438
  %440 = vadd.xlane.f32.xlu0 %v410
  %v441 = vpop.xlane.xlu0 %440
  %442 = vadd.xlane.f32.xlu0 %v411
  %v443 = vpop.xlane.xlu0 %442
  %v444 = vadd.f32 %v316, %v413
  %v445 = vadd.f32 %v317, %v415
  %v446 = vadd.f32 %v318, %v417
  %v447 = vadd.f32 %v319, %v419
  %v448 = vadd.f32 %v320, %v421
  %v449 = vadd.f32 %v321, %v423
  %v450 = vadd.f32 %v322, %v425
  %v451 = vadd.f32 %v323, %v427
  %v452 = vadd.f32 %v324, %v429
  %v453 = vadd.f32 %v325, %v431
  %v454 = vadd.f32 %v326, %v433
  %v455 = vadd.f32 %v327, %v435
  %v456 = vadd.f32 %v328, %v437
  %v457 = vadd.f32 %v329, %v439
  %v458 = vadd.f32 %v330, %v441
  %v459 = vadd.f32 %v331, %v443
  %vm460 = vcmask 7168
  %461 = vst.msk [vmem:[#allocation4] sm:$0xff] %vm460, %v444
  %462 = vst.msk [vmem:[#allocation4 + $0x8] sm:$0xff] %vm460, %v445
  %463 = vst.msk [vmem:[#allocation4 + $0x10] sm:$0xff] %vm460, %v446
  %464 = vst.msk [vmem:[#allocation4 + $0x18] sm:$0xff] %vm460, %v447
  %465 = vst.msk [vmem:[#allocation4 + $0x20] sm:$0xff] %vm460, %v448
  %466 = vst.msk [vmem:[#allocation4 + $0x28] sm:$0xff] %vm460, %v449
  %467 = vst.msk [vmem:[#allocation4 + $0x30] sm:$0xff] %vm460, %v450
  %468 = vst.msk [vmem:[#allocation4 + $0x38] sm:$0xff] %vm460, %v451
  %469 = vst.msk [vmem:[#allocation4 + $0x40] sm:$0xff] %vm460, %v452
  %470 = vst.msk [vmem:[#allocation4 + $0x48] sm:$0xff] %vm460, %v453
  %471 = vst.msk [vmem:[#allocation4 + $0x50] sm:$0xff] %vm460, %v454
  %472 = vst.msk [vmem:[#allocation4 + $0x58] sm:$0xff] %vm460, %v455
  %473 = vst.msk [vmem:[#allocation4 + $0x60] sm:$0xff] %vm460, %v456
  %474 = vst.msk [vmem:[#allocation4 + $0x68] sm:$0xff] %vm460, %v457
  %475 = vst.msk [vmem:[#allocation4 + $0x70] sm:$0xff] %vm460, %v458
  %476 = vst.msk [vmem:[#allocation4 + $0x78] sm:$0xff] %vm460, %v459
  %v477 = vld [vmem:[#allocation2] sm:$0xff]
  %v478 = vld [vmem:[#allocation2 + $0x8] sm:$0xff]
  %v479 = vld [vmem:[#allocation2 + $0x10] sm:$0xff]
  %v480 = vld [vmem:[#allocation2 + $0x18] sm:$0xff]
  %v481 = vld [vmem:[#allocation2 + $0x20] sm:$0xff]
  %v482 = vld [vmem:[#allocation2 + $0x28] sm:$0xff]
  %v483 = vld [vmem:[#allocation2 + $0x30] sm:$0xff]
  %v484 = vld [vmem:[#allocation2 + $0x38] sm:$0xff]
  %v485 = vld [vmem:[#allocation2 + $0x40] sm:$0xff]
  %v486 = vld [vmem:[#allocation2 + $0x48] sm:$0xff]
  %v487 = vld [vmem:[#allocation2 + $0x50] sm:$0xff]
  %v488 = vld [vmem:[#allocation2 + $0x58] sm:$0xff]
  %v489 = vld [vmem:[#allocation2 + $0x60] sm:$0xff]
  %v490 = vld [vmem:[#allocation2 + $0x68] sm:$0xff]
  %v491 = vld [vmem:[#allocation2 + $0x70] sm:$0xff]
  %v492 = vld [vmem:[#allocation2 + $0x78] sm:$0xff]
  %493 = vmax.xlane.f32.xlu0 %v284
  %v494 = vpop.xlane.xlu0 %493
  %495 = vmax.xlane.f32.xlu0 %v285
  %v496 = vpop.xlane.xlu0 %495
  %497 = vmax.xlane.f32.xlu0 %v286
  %v498 = vpop.xlane.xlu0 %497
  %499 = vmax.xlane.f32.xlu0 %v287
  %v500 = vpop.xlane.xlu0 %499
  %501 = vmax.xlane.f32.xlu0 %v288
  %v502 = vpop.xlane.xlu0 %501
  %503 = vmax.xlane.f32.xlu0 %v289
  %v504 = vpop.xlane.xlu0 %503
  %505 = vmax.xlane.f32.xlu0 %v290
  %v506 = vpop.xlane.xlu0 %505
  %507 = vmax.xlane.f32.xlu0 %v291
  %v508 = vpop.xlane.xlu0 %507
  %509 = vmax.xlane.f32.xlu0 %v292
  %v510 = vpop.xlane.xlu0 %509
  %511 = vmax.xlane.f32.xlu0 %v293
  %v512 = vpop.xlane.xlu0 %511
  %513 = vmax.xlane.f32.xlu0 %v294
  %v514 = vpop.xlane.xlu0 %513
  %515 = vmax.xlane.f32.xlu0 %v295
  %v516 = vpop.xlane.xlu0 %515
  %517 = vmax.xlane.f32.xlu0 %v296
  %v518 = vpop.xlane.xlu0 %517
  %519 = vmax.xlane.f32.xlu0 %v297
  %v520 = vpop.xlane.xlu0 %519
  %521 = vmax.xlane.f32.xlu0 %v298
  %v522 = vpop.xlane.xlu0 %521
  %523 = vmax.xlane.f32.xlu0 %v299
  %v524 = vpop.xlane.xlu0 %523
  %v525 = vmax.f32 %v477, %v494
  %v526 = vmax.f32 %v478, %v496
  %v527 = vmax.f32 %v479, %v498
  %v528 = vmax.f32 %v480, %v500
  %v529 = vmax.f32 %v481, %v502
  %v530 = vmax.f32 %v482, %v504
  %v531 = vmax.f32 %v483, %v506
  %v532 = vmax.f32 %v484, %v508
  %v533 = vmax.f32 %v485, %v510
  %v534 = vmax.f32 %v486, %v512
  %v535 = vmax.f32 %v487, %v514
  %v536 = vmax.f32 %v488, %v516
  %v537 = vmax.f32 %v489, %v518
  %v538 = vmax.f32 %v490, %v520
  %v539 = vmax.f32 %v491, %v522
  %v540 = vmax.f32 %v492, %v524
  %v541 = vld [vmem:[#allocation3] sm:$0xff]
  %v542 = vld [vmem:[#allocation3 + $0x8] sm:$0xff]
  %v543 = vld [vmem:[#allocation3 + $0x10] sm:$0xff]
  %v544 = vld [vmem:[#allocation3 + $0x18] sm:$0xff]
  %v545 = vld [vmem:[#allocation3 + $0x20] sm:$0xff]
  %v546 = vld [vmem:[#allocation3 + $0x28] sm:$0xff]
  %v547 = vld [vmem:[#allocation3 + $0x30] sm:$0xff]
  %v548 = vld [vmem:[#allocation3 + $0x38] sm:$0xff]
  %v549 = vld [vmem:[#allocation3 + $0x40] sm:$0xff]
  %v550 = vld [vmem:[#allocation3 + $0x48] sm:$0xff]
  %v551 = vld [vmem:[#allocation3 + $0x50] sm:$0xff]
  %v552 = vld [vmem:[#allocation3 + $0x58] sm:$0xff]
  %v553 = vld [vmem:[#allocation3 + $0x60] sm:$0xff]
  %v554 = vld [vmem:[#allocation3 + $0x68] sm:$0xff]
  %v555 = vld [vmem:[#allocation3 + $0x70] sm:$0xff]
  %v556 = vld [vmem:[#allocation3 + $0x78] sm:$0xff]
  %v557 = vsub.f32 %v477, %v525
  %v558 = vsub.f32 %v478, %v526
  %v559 = vsub.f32 %v479, %v527
  %v560 = vsub.f32 %v480, %v528
  %v561 = vsub.f32 %v481, %v529
  %v562 = vsub.f32 %v482, %v530
  %v563 = vsub.f32 %v483, %v531
  %v564 = vsub.f32 %v484, %v532
  %v565 = vsub.f32 %v485, %v533
  %v566 = vsub.f32 %v486, %v534
  %v567 = vsub.f32 %v487, %v535
  %v568 = vsub.f32 %v488, %v536
  %v569 = vsub.f32 %v489, %v537
  %v570 = vsub.f32 %v490, %v538
  %v571 = vsub.f32 %v491, %v539
  %v572 = vsub.f32 %v492, %v540
  %v573 = vmul.f32 %v557, 1.442695
  %v574 = vpow.pop %v573
  %v575 = vmul.f32 %v558, 1.442695
  %v576 = vpow.pop %v575
  %v577 = vmul.f32 %v559, 1.442695
  %v578 = vpow.pop %v577
  %v579 = vmul.f32 %v560, 1.442695
  %v580 = vpow.pop %v579
  %v581 = vmul.f32 %v561, 1.442695
  %v582 = vpow.pop %v581
  %v583 = vmul.f32 %v562, 1.442695
  %v584 = vpow.pop %v583
  %v585 = vmul.f32 %v563, 1.442695
  %v586 = vpow.pop %v585
  %v587 = vmul.f32 %v564, 1.442695
  %v588 = vpow.pop %v587
  %v589 = vmul.f32 %v565, 1.442695
  %v590 = vpow.pop %v589
  %v591 = vmul.f32 %v566, 1.442695
  %v592 = vpow.pop %v591
  %v593 = vmul.f32 %v567, 1.442695
  %v594 = vpow.pop %v593
  %v595 = vmul.f32 %v568, 1.442695
  %v596 = vpow.pop %v595
  %v597 = vmul.f32 %v569, 1.442695
  %v598 = vpow.pop %v597
  %v599 = vmul.f32 %v570, 1.442695
  %v600 = vpow.pop %v599
  %v601 = vmul.f32 %v571, 1.442695
  %v602 = vpow.pop %v601
  %v603 = vmul.f32 %v572, 1.442695
  %v604 = vpow.pop %v603
  %v605 = vmul.f32 %v541, %v574
  %v606 = vmul.f32 %v542, %v576
  %v607 = vmul.f32 %v543, %v578
  %v608 = vmul.f32 %v544, %v580
  %v609 = vmul.f32 %v545, %v582
  %v610 = vmul.f32 %v546, %v584
  %v611 = vmul.f32 %v547, %v586
  %v612 = vmul.f32 %v548, %v588
  %v613 = vmul.f32 %v549, %v590
  %v614 = vmul.f32 %v550, %v592
  %v615 = vmul.f32 %v551, %v594
  %v616 = vmul.f32 %v552, %v596
  %v617 = vmul.f32 %v553, %v598
  %v618 = vmul.f32 %v554, %v600
  %v619 = vmul.f32 %v555, %v602
  %v620 = vmul.f32 %v556, %v604
  %622 = vset.pattern.permute.xlu0 0
  %623 = vperm.xlu0 %622, %v525
  %v624 = vpop.permute.xlu0 %623
  %627 = vset.pattern.permute.xlu0 0
  %628 = vperm.xlu0 %627, %v526
  %v629 = vpop.permute.xlu0 %628
  %632 = vset.pattern.permute.xlu0 0
  %633 = vperm.xlu0 %632, %v527
  %v634 = vpop.permute.xlu0 %633
  %637 = vset.pattern.permute.xlu0 0
  %638 = vperm.xlu0 %637, %v528
  %v639 = vpop.permute.xlu0 %638
  %642 = vset.pattern.permute.xlu0 0
  %643 = vperm.xlu0 %642, %v529
  %v644 = vpop.permute.xlu0 %643
  %647 = vset.pattern.permute.xlu0 0
  %648 = vperm.xlu0 %647, %v530
  %v649 = vpop.permute.xlu0 %648
  %652 = vset.pattern.permute.xlu0 0
  %653 = vperm.xlu0 %652, %v531
  %v654 = vpop.permute.xlu0 %653
  %657 = vset.pattern.permute.xlu0 0
  %658 = vperm.xlu0 %657, %v532
  %v659 = vpop.permute.xlu0 %658
  %662 = vset.pattern.permute.xlu0 0
  %663 = vperm.xlu0 %662, %v533
  %v664 = vpop.permute.xlu0 %663
  %667 = vset.pattern.permute.xlu0 0
  %668 = vperm.xlu0 %667, %v534
  %v669 = vpop.permute.xlu0 %668
  %672 = vset.pattern.permute.xlu0 0
  %673 = vperm.xlu0 %672, %v535
  %v674 = vpop.permute.xlu0 %673
  %677 = vset.pattern.permute.xlu0 0
  %678 = vperm.xlu0 %677, %v536
  %v679 = vpop.permute.xlu0 %678
  %682 = vset.pattern.permute.xlu0 0
  %683 = vperm.xlu0 %682, %v537
  %v684 = vpop.permute.xlu0 %683
  %687 = vset.pattern.permute.xlu0 0
  %688 = vperm.xlu0 %687, %v538
  %v689 = vpop.permute.xlu0 %688
  %692 = vset.pattern.permute.xlu0 0
  %693 = vperm.xlu0 %692, %v539
  %v694 = vpop.permute.xlu0 %693
  %697 = vset.pattern.permute.xlu0 0
  %698 = vperm.xlu0 %697, %v540
  %v699 = vpop.permute.xlu0 %698
  %v701 = vsub.f32 %v284, %v624
  %v702 = vsub.f32 %v285, %v629
  %v703 = vsub.f32 %v286, %v634
  %v704 = vsub.f32 %v287, %v639
  %v705 = vsub.f32 %v288, %v644
  %v706 = vsub.f32 %v289, %v649
  %v707 = vsub.f32 %v290, %v654
  %v708 = vsub.f32 %v291, %v659
  %v709 = vsub.f32 %v292, %v664
  %v710 = vsub.f32 %v293, %v669
  %v711 = vsub.f32 %v294, %v674
  %v712 = vsub.f32 %v295, %v679
  %v713 = vsub.f32 %v296, %v684
  %v714 = vsub.f32 %v297, %v689
  %v715 = vsub.f32 %v298, %v694
  %v716 = vsub.f32 %v299, %v699
  %v717 = vmul.f32 %v701, 1.442695
  %v718 = vpow.pop %v717
  %v719 = vmul.f32 %v702, 1.442695
  %v720 = vpow.pop %v719
  %v721 = vmul.f32 %v703, 1.442695
  %v722 = vpow.pop %v721
  %v723 = vmul.f32 %v704, 1.442695
  %v724 = vpow.pop %v723
  %v725 = vmul.f32 %v705, 1.442695
  %v726 = vpow.pop %v725
  %v727 = vmul.f32 %v706, 1.442695
  %v728 = vpow.pop %v727
  %v729 = vmul.f32 %v707, 1.442695
  %v730 = vpow.pop %v729
  %v731 = vmul.f32 %v708, 1.442695
  %v732 = vpow.pop %v731
  %v733 = vmul.f32 %v709, 1.442695
  %v734 = vpow.pop %v733
  %v735 = vmul.f32 %v710, 1.442695
  %v736 = vpow.pop %v735
  %v737 = vmul.f32 %v711, 1.442695
  %v738 = vpow.pop %v737
  %v739 = vmul.f32 %v712, 1.442695
  %v740 = vpow.pop %v739
  %v741 = vmul.f32 %v713, 1.442695
  %v742 = vpow.pop %v741
  %v743 = vmul.f32 %v714, 1.442695
  %v744 = vpow.pop %v743
  %v745 = vmul.f32 %v715, 1.442695
  %v746 = vpow.pop %v745
  %v747 = vmul.f32 %v716, 1.442695
  %v748 = vpow.pop %v747
  %749 = vadd.xlane.f32.xlu0 %v718
  %v750 = vpop.xlane.xlu0 %749
  %751 = vadd.xlane.f32.xlu0 %v720
  %v752 = vpop.xlane.xlu0 %751
  %753 = vadd.xlane.f32.xlu0 %v722
  %v754 = vpop.xlane.xlu0 %753
  %755 = vadd.xlane.f32.xlu0 %v724
  %v756 = vpop.xlane.xlu0 %755
  %757 = vadd.xlane.f32.xlu0 %v726
  %v758 = vpop.xlane.xlu0 %757
  %759 = vadd.xlane.f32.xlu0 %v728
  %v760 = vpop.xlane.xlu0 %759
  %761 = vadd.xlane.f32.xlu0 %v730
  %v762 = vpop.xlane.xlu0 %761
  %763 = vadd.xlane.f32.xlu0 %v732
  %v764 = vpop.xlane.xlu0 %763
  %765 = vadd.xlane.f32.xlu0 %v734
  %v766 = vpop.xlane.xlu0 %765
  %767 = vadd.xlane.f32.xlu0 %v736
  %v768 = vpop.xlane.xlu0 %767
  %769 = vadd.xlane.f32.xlu0 %v738
  %v770 = vpop.xlane.xlu0 %769
  %771 = vadd.xlane.f32.xlu0 %v740
  %v772 = vpop.xlane.xlu0 %771
  %773 = vadd.xlane.f32.xlu0 %v742
  %v774 = vpop.xlane.xlu0 %773
  %775 = vadd.xlane.f32.xlu0 %v744
  %v776 = vpop.xlane.xlu0 %775
  %777 = vadd.xlane.f32.xlu0 %v746
  %v778 = vpop.xlane.xlu0 %777
  %779 = vadd.xlane.f32.xlu0 %v748
  %v780 = vpop.xlane.xlu0 %779
  %v781 = vadd.f32 %v605, %v750
  %v782 = vadd.f32 %v606, %v752
  %v783 = vadd.f32 %v607, %v754
  %v784 = vadd.f32 %v608, %v756
  %v785 = vadd.f32 %v609, %v758
  %v786 = vadd.f32 %v610, %v760
  %v787 = vadd.f32 %v611, %v762
  %v788 = vadd.f32 %v612, %v764
  %v789 = vadd.f32 %v613, %v766
  %v790 = vadd.f32 %v614, %v768
  %v791 = vadd.f32 %v615, %v770
  %v792 = vadd.f32 %v616, %v772
  %v793 = vadd.f32 %v617, %v774
  %v794 = vadd.f32 %v618, %v776
  %v795 = vadd.f32 %v619, %v778
  %v796 = vadd.f32 %v620, %v780
  %797 = vst.msk [vmem:[#allocation3] sm:$0xff] %vm460, %v781
  %798 = vst.msk [vmem:[#allocation3 + $0x8] sm:$0xff] %vm460, %v782
  %799 = vst.msk [vmem:[#allocation3 + $0x10] sm:$0xff] %vm460, %v783
  %800 = vst.msk [vmem:[#allocation3 + $0x18] sm:$0xff] %vm460, %v784
  %801 = vst.msk [vmem:[#allocation3 + $0x20] sm:$0xff] %vm460, %v785
  %802 = vst.msk [vmem:[#allocation3 + $0x28] sm:$0xff] %vm460, %v786
  %803 = vst.msk [vmem:[#allocation3 + $0x30] sm:$0xff] %vm460, %v787
  %804 = vst.msk [vmem:[#allocation3 + $0x38] sm:$0xff] %vm460, %v788
  %805 = vst.msk [vmem:[#allocation3 + $0x40] sm:$0xff] %vm460, %v789
  %806 = vst.msk [vmem:[#allocation3 + $0x48] sm:$0xff] %vm460, %v790
  %807 = vst.msk [vmem:[#allocation3 + $0x50] sm:$0xff] %vm460, %v791
  %808 = vst.msk [vmem:[#allocation3 + $0x58] sm:$0xff] %vm460, %v792
  %809 = vst.msk [vmem:[#allocation3 + $0x60] sm:$0xff] %vm460, %v793
  %810 = vst.msk [vmem:[#allocation3 + $0x68] sm:$0xff] %vm460, %v794
  %811 = vst.msk [vmem:[#allocation3 + $0x70] sm:$0xff] %vm460, %v795
  %812 = vst.msk [vmem:[#allocation3 + $0x78] sm:$0xff] %vm460, %v796
  %813 = vst.msk [vmem:[#allocation2] sm:$0xff] %vm460, %v525
  %814 = vst.msk [vmem:[#allocation2 + $0x8] sm:$0xff] %vm460, %v526
  %815 = vst.msk [vmem:[#allocation2 + $0x10] sm:$0xff] %vm460, %v527
  %816 = vst.msk [vmem:[#allocation2 + $0x18] sm:$0xff] %vm460, %v528
  %817 = vst.msk [vmem:[#allocation2 + $0x20] sm:$0xff] %vm460, %v529
  %818 = vst.msk [vmem:[#allocation2 + $0x28] sm:$0xff] %vm460, %v530
  %819 = vst.msk [vmem:[#allocation2 + $0x30] sm:$0xff] %vm460, %v531
  %820 = vst.msk [vmem:[#allocation2 + $0x38] sm:$0xff] %vm460, %v532
  %821 = vst.msk [vmem:[#allocation2 + $0x40] sm:$0xff] %vm460, %v533
  %822 = vst.msk [vmem:[#allocation2 + $0x48] sm:$0xff] %vm460, %v534
  %823 = vst.msk [vmem:[#allocation2 + $0x50] sm:$0xff] %vm460, %v535
  %824 = vst.msk [vmem:[#allocation2 + $0x58] sm:$0xff] %vm460, %v536
  %825 = vst.msk [vmem:[#allocation2 + $0x60] sm:$0xff] %vm460, %v537
  %826 = vst.msk [vmem:[#allocation2 + $0x68] sm:$0xff] %vm460, %v538
  %827 = vst.msk [vmem:[#allocation2 + $0x70] sm:$0xff] %vm460, %v539
  %828 = vst.msk [vmem:[#allocation2 + $0x78] sm:$0xff] %vm460, %v540
  // Predicated region
  $region18: #{forward.3} parent=0 // pred_check
    %p829 = pneg %p15
  $region19: #{forward.3} parent=0 // pred_check_branch
    %831 = sbr.rel (%p829) target = $region21
  $region20: #{forward.3} parent=0 // pred_region
    %v832 = vld [vmem:[#allocation2] sm:$0xff]
    %v833 = vld [vmem:[#allocation2 + $0x8] sm:$0xff]
    %v834 = vld [vmem:[#allocation2 + $0x10] sm:$0xff]
    %v835 = vld [vmem:[#allocation2 + $0x18] sm:$0xff]
    %v836 = vld [vmem:[#allocation2 + $0x20] sm:$0xff]
    %v837 = vld [vmem:[#allocation2 + $0x28] sm:$0xff]
    %v838 = vld [vmem:[#allocation2 + $0x30] sm:$0xff]
    %v839 = vld [vmem:[#allocation2 + $0x38] sm:$0xff]
    %v840 = vld [vmem:[#allocation2 + $0x40] sm:$0xff]
    %v841 = vld [vmem:[#allocation2 + $0x48] sm:$0xff]
    %v842 = vld [vmem:[#allocation2 + $0x50] sm:$0xff]
    %v843 = vld [vmem:[#allocation2 + $0x58] sm:$0xff]
    %v844 = vld [vmem:[#allocation2 + $0x60] sm:$0xff]
    %v845 = vld [vmem:[#allocation2 + $0x68] sm:$0xff]
    %v846 = vld [vmem:[#allocation2 + $0x70] sm:$0xff]
    %v847 = vld [vmem:[#allocation2 + $0x78] sm:$0xff]
    %v848 = vld [vmem:[#allocation3] sm:$0xff]
    %v849 = vld [vmem:[#allocation3 + $0x8] sm:$0xff]
    %v850 = vld [vmem:[#allocation3 + $0x10] sm:$0xff]
    %v851 = vld [vmem:[#allocation3 + $0x18] sm:$0xff]
    %v852 = vld [vmem:[#allocation3 + $0x20] sm:$0xff]
    %v853 = vld [vmem:[#allocation3 + $0x28] sm:$0xff]
    %v854 = vld [vmem:[#allocation3 + $0x30] sm:$0xff]
    %v855 = vld [vmem:[#allocation3 + $0x38] sm:$0xff]
    %v856 = vld [vmem:[#allocation3 + $0x40] sm:$0xff]
    %v857 = vld [vmem:[#allocation3 + $0x48] sm:$0xff]
    %v858 = vld [vmem:[#allocation3 + $0x50] sm:$0xff]
    %v859 = vld [vmem:[#allocation3 + $0x58] sm:$0xff]
    %v860 = vld [vmem:[#allocation3 + $0x60] sm:$0xff]
    %v861 = vld [vmem:[#allocation3 + $0x68] sm:$0xff]
    %v862 = vld [vmem:[#allocation3 + $0x70] sm:$0xff]
    %v863 = vld [vmem:[#allocation3 + $0x78] sm:$0xff]
    %v864 = vlog2.pop %v848
    %v865 = vmul.f32 %v864, 0.6931472
    %v866 = vlog2.pop %v849
    %v867 = vmul.f32 %v866, 0.6931472
    %v868 = vlog2.pop %v850
    %v869 = vmul.f32 %v868, 0.6931472
    %v870 = vlog2.pop %v851
    %v871 = vmul.f32 %v870, 0.6931472
    %v872 = vlog2.pop %v852
    %v873 = vmul.f32 %v872, 0.6931472
    %v874 = vlog2.pop %v853
    %v875 = vmul.f32 %v874, 0.6931472
    %v876 = vlog2.pop %v854
    %v877 = vmul.f32 %v876, 0.6931472
    %v878 = vlog2.pop %v855
    %v879 = vmul.f32 %v878, 0.6931472
    %v880 = vlog2.pop %v856
    %v881 = vmul.f32 %v880, 0.6931472
    %v882 = vlog2.pop %v857
    %v883 = vmul.f32 %v882, 0.6931472
    %v884 = vlog2.pop %v858
    %v885 = vmul.f32 %v884, 0.6931472
    %v886 = vlog2.pop %v859
    %v887 = vmul.f32 %v886, 0.6931472
    %v888 = vlog2.pop %v860
    %v889 = vmul.f32 %v888, 0.6931472
    %v890 = vlog2.pop %v861
    %v891 = vmul.f32 %v890, 0.6931472
    %v892 = vlog2.pop %v862
    %v893 = vmul.f32 %v892, 0.6931472
    %v894 = vlog2.pop %v863
    %v895 = vmul.f32 %v894, 0.6931472
    %v896 = vadd.f32 %v832, %v865
    %v897 = vadd.f32 %v833, %v867
    %v898 = vadd.f32 %v834, %v869
    %v899 = vadd.f32 %v835, %v871
    %v900 = vadd.f32 %v836, %v873
    %v901 = vadd.f32 %v837, %v875
    %v902 = vadd.f32 %v838, %v877
    %v903 = vadd.f32 %v839, %v879
    %v904 = vadd.f32 %v840, %v881
    %v905 = vadd.f32 %v841, %v883
    %v906 = vadd.f32 %v842, %v885
    %v907 = vadd.f32 %v843, %v887
    %v908 = vadd.f32 %v844, %v889
    %v909 = vadd.f32 %v845, %v891
    %v910 = vadd.f32 %v846, %v893
    %v911 = vadd.f32 %v847, %v895
    %v912 = vld [vmem:[#allocation4] sm:$0xff]
    %v913 = vld [vmem:[#allocation4 + $0x8] sm:$0xff]
    %v914 = vld [vmem:[#allocation4 + $0x10] sm:$0xff]
    %v915 = vld [vmem:[#allocation4 + $0x18] sm:$0xff]
    %v916 = vld [vmem:[#allocation4 + $0x20] sm:$0xff]
    %v917 = vld [vmem:[#allocation4 + $0x28] sm:$0xff]
    %v918 = vld [vmem:[#allocation4 + $0x30] sm:$0xff]
    %v919 = vld [vmem:[#allocation4 + $0x38] sm:$0xff]
    %v920 = vld [vmem:[#allocation4 + $0x40] sm:$0xff]
    %v921 = vld [vmem:[#allocation4 + $0x48] sm:$0xff]
    %v922 = vld [vmem:[#allocation4 + $0x50] sm:$0xff]
    %v923 = vld [vmem:[#allocation4 + $0x58] sm:$0xff]
    %v924 = vld [vmem:[#allocation4 + $0x60] sm:$0xff]
    %v925 = vld [vmem:[#allocation4 + $0x68] sm:$0xff]
    %v926 = vld [vmem:[#allocation4 + $0x70] sm:$0xff]
    %v927 = vld [vmem:[#allocation4 + $0x78] sm:$0xff]
    %v928 = vsub.f32 %v912, %v896
    %v929 = vsub.f32 %v913, %v897
    %v930 = vsub.f32 %v914, %v898
    %v931 = vsub.f32 %v915, %v899
    %v932 = vsub.f32 %v916, %v900
    %v933 = vsub.f32 %v917, %v901
    %v934 = vsub.f32 %v918, %v902
    %v935 = vsub.f32 %v919, %v903
    %v936 = vsub.f32 %v920, %v904
    %v937 = vsub.f32 %v921, %v905
    %v938 = vsub.f32 %v922, %v906
    %v939 = vsub.f32 %v923, %v907
    %v940 = vsub.f32 %v924, %v908
    %v941 = vsub.f32 %v925, %v909
    %v942 = vsub.f32 %v926, %v910
    %v943 = vsub.f32 %v927, %v911
    %945 = vset.pattern.permute.xlu0 0
    %946 = vperm.xlu0 %945, %v928
    %v947 = vpop.permute.xlu0 %946
    %950 = vset.pattern.permute.xlu0 0
    %951 = vperm.xlu0 %950, %v929
    %v952 = vpop.permute.xlu0 %951
    %955 = vset.pattern.permute.xlu0 0
    %956 = vperm.xlu0 %955, %v930
    %v957 = vpop.permute.xlu0 %956
    %960 = vset.pattern.permute.xlu0 0
    %961 = vperm.xlu0 %960, %v931
    %v962 = vpop.permute.xlu0 %961
    %965 = vset.pattern.permute.xlu0 0
    %966 = vperm.xlu0 %965, %v932
    %v967 = vpop.permute.xlu0 %966
    %970 = vset.pattern.permute.xlu0 0
    %971 = vperm.xlu0 %970, %v933
    %v972 = vpop.permute.xlu0 %971
    %975 = vset.pattern.permute.xlu0 0
    %976 = vperm.xlu0 %975, %v934
    %v977 = vpop.permute.xlu0 %976
    %980 = vset.pattern.permute.xlu0 0
    %981 = vperm.xlu0 %980, %v935
    %v982 = vpop.permute.xlu0 %981
    %985 = vset.pattern.permute.xlu0 0
    %986 = vperm.xlu0 %985, %v936
    %v987 = vpop.permute.xlu0 %986
    %990 = vset.pattern.permute.xlu0 0
    %991 = vperm.xlu0 %990, %v937
    %v992 = vpop.permute.xlu0 %991
    %995 = vset.pattern.permute.xlu0 0
    %996 = vperm.xlu0 %995, %v938
    %v997 = vpop.permute.xlu0 %996
    %1000 = vset.pattern.permute.xlu0 0
    %1001 = vperm.xlu0 %1000, %v939
    %v1002 = vpop.permute.xlu0 %1001
    %1005 = vset.pattern.permute.xlu0 0
    %1006 = vperm.xlu0 %1005, %v940
    %v1007 = vpop.permute.xlu0 %1006
    %1010 = vset.pattern.permute.xlu0 0
    %1011 = vperm.xlu0 %1010, %v941
    %v1012 = vpop.permute.xlu0 %1011
    %1015 = vset.pattern.permute.xlu0 0
    %1016 = vperm.xlu0 %1015, %v942
    %v1017 = vpop.permute.xlu0 %1016
    %1020 = vset.pattern.permute.xlu0 0
    %1021 = vperm.xlu0 %1020, %v943
    %v1022 = vpop.permute.xlu0 %1021
    %1024 = vst [vmem:[%s3] sm:$0xff] %v947
    %1025 = vst [vmem:[%s3 + $0x8] sm:$0xff] %v952
    %1026 = vst [vmem:[%s3 + $0x10] sm:$0xff] %v957
    %1027 = vst [vmem:[%s3 + $0x18] sm:$0xff] %v962
    %1028 = vst [vmem:[%s3 + $0x20] sm:$0xff] %v967
    %1029 = vst [vmem:[%s3 + $0x28] sm:$0xff] %v972
    %1030 = vst [vmem:[%s3 + $0x30] sm:$0xff] %v977
    %1031 = vst [vmem:[%s3 + $0x38] sm:$0xff] %v982
    %1032 = vst [vmem:[%s3 + $0x40] sm:$0xff] %v987
    %1033 = vst [vmem:[%s3 + $0x48] sm:$0xff] %v992
    %1034 = vst [vmem:[%s3 + $0x50] sm:$0xff] %v997
    %1035 = vst [vmem:[%s3 + $0x58] sm:$0xff] %v1002
    %1036 = vst [vmem:[%s3 + $0x60] sm:$0xff] %v1007
    %1037 = vst [vmem:[%s3 + $0x68] sm:$0xff] %v1012
    %1038 = vst [vmem:[%s3 + $0x70] sm:$0xff] %v1017
    %1039 = vst [vmem:[%s3 + $0x78] sm:$0xff] %v1022
  $region21: #{forward.3} parent=0 // pred_fallthru
    _
  // Predicated region
  $region22: #{forward.3} parent=0 // pred_check
    _
  $region23: #{forward.3} parent=0 // pred_check_branch
    %1041 = sbr.rel (0) target = $region25
  $region24: #{forward.3} parent=0 // pred_region
    _
  $region25: #{forward.3} parent=0 // pred_fallthru
    _
  // Predicated region
  $region26: #{forward.3} parent=0 // pred_check
    _
  $region27: #{forward.3} parent=0 // pred_check_branch
    %1043 = sbr.rel (0) target = $region29
  $region28: #{forward.3} parent=0 // pred_region
    _
  $region29: #{forward.3} parent=0 // pred_fallthru
    _

// kernel: forward.4
$region0: #{forward.4}
  #allocation0 [shape = 'u32[]', space=smem, size = 0x4, offset = 0x4, fixed_abs, tag = 'smem constant byte address 0x4 - core index']
  #allocation1 [shape = 'u32[144,128]{1,0:T(1,128)}', space=vmem, size = 0x12000, scoped, tag = 'internal scratch']
  #allocation2 [shape = 'f32[128,1]{1,0:T(8,128)}', space=vmem, size = 0x10000, scoped, tag = 'scratch operand']
  #allocation3 [shape = 'f32[128,1]{1,0:T(8,128)}', space=vmem, size = 0x10000, scoped, tag = 'scratch operand']
  #allocation4 [shape = 'f32[128,1]{1,0:T(8,128)}', space=vmem, size = 0x10000, scoped, tag = 'scratch operand']
  #allocation5 [shape = 'bf16[128,128]{1,0:T(16,128)(2,1)}', space=vmem, size = 0x8000, scoped, tag = 'scratch operand']
  %s0 = inlined_call_operand.vmem [shape: bf16[128,64], index: 0, kind: input, shape index: {}]
  %s1 = inlined_call_operand.vmem [shape: bf16[64,128], index: 1, kind: input, shape index: {}]
  %s2 = inlined_call_operand.vmem [shape: bf16[128,128], index: 2, kind: input, shape index: {}]
  %s3 = inlined_call_operand.vmem [shape: s32[128,1], index: 3, kind: input, shape index: {}]
  %s4 = inlined_call_operand.vmem [shape: f32[128,128], index: 4, kind: output, shape index: {}]
  %s5 = sld [smem:[#allocation0]]
  $region34: #{forward.4} parent=0
    _
  %s7 = ssub.s32 1, %s5
  %s8 = scalar_select 0, %s7, %s5
  // Predicated region
  $region2: #{forward.4} parent=0 // pred_check
    _
  $region3: #{forward.4} parent=0 // pred_check_branch
    %10 = sbr.rel (0) target = $region5
  $region4: #{forward.4} parent=0 // pred_region
    _
  $region5: #{forward.4} parent=0 // pred_fallthru
    _
  // Predicated region
  $region6: #{forward.4} parent=0 // pred_check
    _
  $region7: #{forward.4} parent=0 // pred_check_branch
    %12 = sbr.rel (0) target = $region9
  $region8: #{forward.4} parent=0 // pred_region
    _
  $region9: #{forward.4} parent=0 // pred_fallthru
    _
  // Predicated region
  $region10: #{forward.4} parent=0 // pred_check
    _
  $region11: #{forward.4} parent=0 // pred_check_branch
    %14 = sbr.rel (0) target = $region13
  $region12: #{forward.4} parent=0 // pred_region
    _
  $region13: #{forward.4} parent=0 // pred_fallthru
    _
  // Predicated region
  $region14: #{forward.4} parent=0 // pred_check
    _
  $region15: #{forward.4} parent=0 // pred_check_branch
    %16 = sbr.rel (0) target = $region17
  $region16: #{forward.4} parent=0 // pred_region
    _
  $region17: #{forward.4} parent=0 // pred_fallthru
    _
  %p18 = scmp.eq.s32.totalorder 0, 0
  // Predicated region
  $region18: #{forward.4} parent=0 // pred_check
    %p19 = pneg %p18
  $region19: #{forward.4} parent=0 // pred_check_branch
    %21 = sbr.rel (%p19) target = $region21
  $region20: #{forward.4} parent=0 // pred_region
    %vm22 = vcmask 7168
    %23 = vst.msk [vmem:[#allocation2] sm:$0xff] %vm22, -1e+30
    %24 = vst.msk [vmem:[#allocation2 + $0x8] sm:$0xff] %vm22, -1e+30
    %25 = vst.msk [vmem:[#allocation2 + $0x10] sm:$0xff] %vm22, -1e+30
    %26 = vst.msk [vmem:[#allocation2 + $0x18] sm:$0xff] %vm22, -1e+30
    %27 = vst.msk [vmem:[#allocation2 + $0x20] sm:$0xff] %vm22, -1e+30
    %28 = vst.msk [vmem:[#allocation2 + $0x28] sm:$0xff] %vm22, -1e+30
    %29 = vst.msk [vmem:[#allocation2 + $0x30] sm:$0xff] %vm22, -1e+30
    %30 = vst.msk [vmem:[#allocation2 + $0x38] sm:$0xff] %vm22, -1e+30
    %31 = vst.msk [vmem:[#allocation2 + $0x40] sm:$0xff] %vm22, -1e+30
    %32 = vst.msk [vmem:[#allocation2 + $0x48] sm:$0xff] %vm22, -1e+30
    %33 = vst.msk [vmem:[#allocation2 + $0x50] sm:$0xff] %vm22, -1e+30
    %34 = vst.msk [vmem:[#allocation2 + $0x58] sm:$0xff] %vm22, -1e+30
    %35 = vst.msk [vmem:[#allocation2 + $0x60] sm:$0xff] %vm22, -1e+30
    %36 = vst.msk [vmem:[#allocation2 + $0x68] sm:$0xff] %vm22, -1e+30
    %37 = vst.msk [vmem:[#allocation2 + $0x70] sm:$0xff] %vm22, -1e+30
    %38 = vst.msk [vmem:[#allocation2 + $0x78] sm:$0xff] %vm22, -1e+30
    %39 = vst.msk [vmem:[#allocation3] sm:$0xff] %vm22, 0.0
    %40 = vst.msk [vmem:[#allocation3 + $0x8] sm:$0xff] %vm22, 0.0
    %41 = vst.msk [vmem:[#allocation3 + $0x10] sm:$0xff] %vm22, 0.0
    %42 = vst.msk [vmem:[#allocation3 + $0x18] sm:$0xff] %vm22, 0.0
    %43 = vst.msk [vmem:[#allocation3 + $0x20] sm:$0xff] %vm22, 0.0
    %44 = vst.msk [vmem:[#allocation3 + $0x28] sm:$0xff] %vm22, 0.0
    %45 = vst.msk [vmem:[#allocation3 + $0x30] sm:$0xff] %vm22, 0.0
    %46 = vst.msk [vmem:[#allocation3 + $0x38] sm:$0xff] %vm22, 0.0
    %47 = vst.msk [vmem:[#allocation3 + $0x40] sm:$0xff] %vm22, 0.0
    %48 = vst.msk [vmem:[#allocation3 + $0x48] sm:$0xff] %vm22, 0.0
    %49 = vst.msk [vmem:[#allocation3 + $0x50] sm:$0xff] %vm22, 0.0
    %50 = vst.msk [vmem:[#allocation3 + $0x58] sm:$0xff] %vm22, 0.0
    %51 = vst.msk [vmem:[#allocation3 + $0x60] sm:$0xff] %vm22, 0.0
    %52 = vst.msk [vmem:[#allocation3 + $0x68] sm:$0xff] %vm22, 0.0
    %53 = vst.msk [vmem:[#allocation3 + $0x70] sm:$0xff] %vm22, 0.0
    %54 = vst.msk [vmem:[#allocation3 + $0x78] sm:$0xff] %vm22, 0.0
    %55 = vst.msk [vmem:[#allocation4] sm:$0xff] %vm22, 0.0
    %56 = vst.msk [vmem:[#allocation4 + $0x8] sm:$0xff] %vm22, 0.0
    %57 = vst.msk [vmem:[#allocation4 + $0x10] sm:$0xff] %vm22, 0.0
    %58 = vst.msk [vmem:[#allocation4 + $0x18] sm:$0xff] %vm22, 0.0
    %59 = vst.msk [vmem:[#allocation4 + $0x20] sm:$0xff] %vm22, 0.0
    %60 = vst.msk [vmem:[#allocation4 + $0x28] sm:$0xff] %vm22, 0.0
    %61 = vst.msk [vmem:[#allocation4 + $0x30] sm:$0xff] %vm22, 0.0
    %62 = vst.msk [vmem:[#allocation4 + $0x38] sm:$0xff] %vm22, 0.0
    %63 = vst.msk [vmem:[#allocation4 + $0x40] sm:$0xff] %vm22, 0.0
    %64 = vst.msk [vmem:[#allocation4 + $0x48] sm:$0xff] %vm22, 0.0
    %65 = vst.msk [vmem:[#allocation4 + $0x50] sm:$0xff] %vm22, 0.0
    %66 = vst.msk [vmem:[#allocation4 + $0x58] sm:$0xff] %vm22, 0.0
    %67 = vst.msk [vmem:[#allocation4 + $0x60] sm:$0xff] %vm22, 0.0
    %68 = vst.msk [vmem:[#allocation4 + $0x68] sm:$0xff] %vm22, 0.0
    %69 = vst.msk [vmem:[#allocation4 + $0x70] sm:$0xff] %vm22, 0.0
    %70 = vst.msk [vmem:[#allocation4 + $0x78] sm:$0xff] %vm22, 0.0
    %v71 = vld [vmem:[%s0] sm:$0xf]
    %v72 = vld [vmem:[%s0 + $0x4] sm:$0xf]
    %v73 = vld [vmem:[%s0 + $0x8] sm:$0xf]
    %v74 = vld [vmem:[%s0 + $0xc] sm:$0xf]
    %v75 = vld [vmem:[%s0 + $0x10] sm:$0xf]
    %v76 = vld [vmem:[%s0 + $0x14] sm:$0xf]
    %v77 = vld [vmem:[%s0 + $0x18] sm:$0xf]
    %v78 = vld [vmem:[%s0 + $0x1c] sm:$0xf]
    %v79 = vld [vmem:[%s0 + $0x20] sm:$0xf]
    %v80 = vld [vmem:[%s0 + $0x24] sm:$0xf]
    %v81 = vld [vmem:[%s0 + $0x28] sm:$0xf]
    %v82 = vld [vmem:[%s0 + $0x2c] sm:$0xf]
    %v83 = vld [vmem:[%s0 + $0x30] sm:$0xf]
    %v84 = vld [vmem:[%s0 + $0x34] sm:$0xf]
    %v85 = vld [vmem:[%s0 + $0x38] sm:$0xf]
    %v86 = vld [vmem:[%s0 + $0x3c] sm:$0xf]
    %v87 = vld [vmem:[%s1] sm:$0xf]
    %v88 = vld [vmem:[%s1 + $0x4] sm:$0xf]
    %v89 = vld [vmem:[%s1 + $0x8] sm:$0xf]
    %v90 = vld [vmem:[%s1 + $0xc] sm:$0xf]
    %v91 = vld [vmem:[%s1 + $0x10] sm:$0xf]
    %v92 = vld [vmem:[%s1 + $0x14] sm:$0xf]
    %v93 = vld [vmem:[%s1 + $0x18] sm:$0xf]
    %v94 = vld [vmem:[%s1 + $0x1c] sm:$0xf]
    %v111 = vunpack.c.l.b16 %v71
    %v112 = vunpack.c.l.b16 %v72
    %v113 = vunpack.c.l.b16 %v73
    %v114 = vunpack.c.l.b16 %v74
    %v115 = vunpack.c.l.b16 %v75
    %v116 = vunpack.c.l.b16 %v76
    %v117 = vunpack.c.l.b16 %v77
    %v118 = vunpack.c.l.b16 %v78
    %v119 = vunpack.c.l.b16 %v79
    %v120 = vunpack.c.l.b16 %v80
    %v121 = vunpack.c.l.b16 %v81
    %v122 = vunpack.c.l.b16 %v82
    %v123 = vunpack.c.l.b16 %v83
    %v124 = vunpack.c.l.b16 %v84
    %v125 = vunpack.c.l.b16 %v85
    %v126 = vunpack.c.l.b16 %v86
    %v127 = vpack.c.b16 %v112, %v111
    %v128 = vpack.c.b16 %v114, %v113
    %v129 = vpack.c.b16 %v116, %v115
    %v130 = vpack.c.b16 %v118, %v117
    %v131 = vpack.c.b16 %v120, %v119
    %v132 = vpack.c.b16 %v122, %v121
    %v133 = vpack.c.b16 %v124, %v123
    %v134 = vpack.c.b16 %v126, %v125
    %v143 = vunpack.c.l.b16 %v87
    %v144 = vunpack.c.l.b16 %v88
    %v145 = vunpack.c.l.b16 %v89
    %v146 = vunpack.c.l.b16 %v90
    %v147 = vunpack.c.l.b16 %v91
    %v148 = vunpack.c.l.b16 %v92
    %v149 = vunpack.c.l.b16 %v93
    %v150 = vunpack.c.l.b16 %v94
    %v151 = vpack.c.b16 %v144, %v143
    %v152 = vpack.c.b16 %v146, %v145
    %v153 = vpack.c.b16 %v148, %v147
    %v154 = vpack.c.b16 %v150, %v149
    %vm159 = vcmask 523264
    %v161 = vsel %vm159, %v127, 0
    %v164 = vsel %vm159, %v128, 0
    %v167 = vsel %vm159, %v129, 0
    %v170 = vsel %vm159, %v130, 0
    %v173 = vsel %vm159, %v131, 0
    %v176 = vsel %vm159, %v132, 0
    %v179 = vsel %vm159, %v133, 0
    %v182 = vsel %vm159, %v134, 0
    %184 = vmatprep.subr.bf16.mxu0 0
    %185 = vmatpush1.bf16.msra.mxu0 %v151
    %186 = vmatprep.subr.bf16.mxu0 0
    %187 = vmatpush1.bf16.msra.mxu0 %v152
    %188 = vmatprep.subr.bf16.mxu0 0
    %189 = vmatpush1.bf16.msra.mxu0 %v153
    %190 = vmatprep.subr.bf16.mxu0 0
    %191 = vmatpush1.bf16.msra.mxu0 %v154
    %192 = vmatprep.subr.bf16.mxu0 0
    %193 = vmatpush1.bf16.msra.mxu0 0
    %194 = vmatprep.subr.bf16.mxu0 0
    %195 = vmatpush1.bf16.msra.mxu0 0
    %196 = vmatprep.subr.bf16.mxu0 0
    %197 = vmatpush1.bf16.msra.mxu0 0
    %198 = vmatprep.subr.bf16.mxu0 0
    %199 = vmatpush1.bf16.msra.mxu0 0
    %200 = vmatprep.subr.bf16.mxu0 0
    %201 = vmatpush1.bf16.msra.mxu0 0
    %202 = vmatprep.subr.bf16.mxu0 0
    %203 = vmatpush1.bf16.msra.mxu0 0
    %204 = vmatprep.subr.bf16.mxu0 0
    %205 = vmatpush1.bf16.msra.mxu0 0
    %206 = vmatprep.subr.bf16.mxu0 0
    %207 = vmatpush1.bf16.msra.mxu0 0
    %208 = vmatprep.subr.bf16.mxu0 0
    %209 = vmatpush1.bf16.msra.mxu0 0
    %210 = vmatprep.subr.bf16.mxu0 0
    %211 = vmatpush1.bf16.msra.mxu0 0
    %212 = vmatprep.subr.bf16.mxu0 0
    %213 = vmatpush1.bf16.msra.mxu0 0
    %214 = vmatprep.subr.bf16.mxu0 0
    %215 = vmatpush1.bf16.msra.mxu0 0
    %216 = vmatprep.mubr.bf16.mxu0 0
    %217 = vmatmul.mubr.bf16.gmra.mrb[0].mxu0 %v161
    %v218 = vpop.f32.mrb[0].mxu0
    %v219 = vadd.f32 0.0, %v218
    %v220 = vpop.f32.mrb[0].mxu0
    %v221 = vpop.f32.mrb[0].mxu0
    %v222 = vadd.f32 0.0, %v221
    %v223 = vpop.f32.mrb[0].mxu0
    %224 = vmatprep.mubr.bf16.mxu0 0
    %225 = vmatmul.mubr.bf16.gmra.mrb[0].mxu0 %v164
    %v226 = vpop.f32.mrb[0].mxu0
    %v227 = vadd.f32 0.0, %v226
    %v228 = vpop.f32.mrb[0].mxu0
    %v229 = vpop.f32.mrb[0].mxu0
    %v230 = vadd.f32 0.0, %v229
    %v231 = vpop.f32.mrb[0].mxu0
    %232 = vmatprep.mubr.bf16.mxu0 0
    %233 = vmatmul.mubr.bf16.gmra.mrb[0].mxu0 %v167
    %v234 = vpop.f32.mrb[0].mxu0
    %v235 = vadd.f32 0.0, %v234
    %v236 = vpop.f32.mrb[0].mxu0
    %v237 = vpop.f32.mrb[0].mxu0
    %v238 = vadd.f32 0.0, %v237
    %v239 = vpop.f32.mrb[0].mxu0
    %240 = vmatprep.mubr.bf16.mxu0 0
    %241 = vmatmul.mubr.bf16.gmra.mrb[0].mxu0 %v170
    %v242 = vpop.f32.mrb[0].mxu0
    %v243 = vadd.f32 0.0, %v242
    %v244 = vpop.f32.mrb[0].mxu0
    %v245 = vpop.f32.mrb[0].mxu0
    %v246 = vadd.f32 0.0, %v245
    %v247 = vpop.f32.mrb[0].mxu0
    %248 = vmatprep.mubr.bf16.mxu0 0
    %249 = vmatmul.mubr.bf16.gmra.mrb[0].mxu0 %v173
    %v250 = vpop.f32.mrb[0].mxu0
    %v251 = vadd.f32 0.0, %v250
    %v252 = vpop.f32.mrb[0].mxu0
    %v253 = vpop.f32.mrb[0].mxu0
    %v254 = vadd.f32 0.0, %v253
    %v255 = vpop.f32.mrb[0].mxu0
    %256 = vmatprep.mubr.bf16.mxu0 0
    %257 = vmatmul.mubr.bf16.gmra.mrb[0].mxu0 %v176
    %v258 = vpop.f32.mrb[0].mxu0
    %v259 = vadd.f32 0.0, %v258
    %v260 = vpop.f32.mrb[0].mxu0
    %v261 = vpop.f32.mrb[0].mxu0
    %v262 = vadd.f32 0.0, %v261
    %v263 = vpop.f32.mrb[0].mxu0
    %264 = vmatprep.mubr.bf16.mxu0 0
    %265 = vmatmul.mubr.bf16.gmra.mrb[0].mxu0 %v179
    %v266 = vpop.f32.mrb[0].mxu0
    %v267 = vadd.f32 0.0, %v266
    %v268 = vpop.f32.mrb[0].mxu0
    %v269 = vpop.f32.mrb[0].mxu0
    %v270 = vadd.f32 0.0, %v269
    %v271 = vpop.f32.mrb[0].mxu0
    %272 = vmatprep.mubr.bf16.mxu0 0
    %273 = vmatmul.mubr.bf16.gmra.mrb[0].mxu0 %v182
    %v274 = vpop.f32.mrb[0].mxu0
    %v275 = vadd.f32 0.0, %v274
    %v276 = vpop.f32.mrb[0].mxu0
    %v277 = vpop.f32.mrb[0].mxu0
    %v278 = vadd.f32 0.0, %v277
    %v279 = vpop.f32.mrb[0].mxu0
    %280 = vdwg.mxu0
    %v281 = vpack.c.bf16 %v222, %v219
    %v282 = vpack.c.bf16 %v230, %v227
    %v283 = vpack.c.bf16 %v238, %v235
    %v284 = vpack.c.bf16 %v246, %v243
    %v285 = vpack.c.bf16 %v254, %v251
    %v286 = vpack.c.bf16 %v262, %v259
    %v287 = vpack.c.bf16 %v270, %v267
    %v288 = vpack.c.bf16 %v278, %v275
    %289 = vst [vmem:[#allocation5] sm:$0xff] %v281
    %290 = vst [vmem:[#allocation5 + $0x8] sm:$0xff] %v282
    %291 = vst [vmem:[#allocation5 + $0x10] sm:$0xff] %v283
    %292 = vst [vmem:[#allocation5 + $0x18] sm:$0xff] %v284
    %293 = vst [vmem:[#allocation5 + $0x20] sm:$0xff] %v285
    %294 = vst [vmem:[#allocation5 + $0x28] sm:$0xff] %v286
    %295 = vst [vmem:[#allocation5 + $0x30] sm:$0xff] %v287
    %296 = vst [vmem:[#allocation5 + $0x38] sm:$0xff] %v288
  $region21: #{forward.4} parent=0 // pred_fallthru
    _
  %v297 = vld [vmem:[#allocation5] sm:$0xff]
  %v298 = vld [vmem:[#allocation5 + $0x8] sm:$0xff]
  %v299 = vld [vmem:[#allocation5 + $0x10] sm:$0xff]
  %v300 = vld [vmem:[#allocation5 + $0x18] sm:$0xff]
  %v301 = vld [vmem:[#allocation5 + $0x20] sm:$0xff]
  %v302 = vld [vmem:[#allocation5 + $0x28] sm:$0xff]
  %v303 = vld [vmem:[#allocation5 + $0x30] sm:$0xff]
  %v304 = vld [vmem:[#allocation5 + $0x38] sm:$0xff]
  %v305 = vld [vmem:[%s2] sm:$0xf]
  %v306 = vld [vmem:[%s2 + $0x4] sm:$0xf]
  %v307 = vld [vmem:[%s2 + $0x8] sm:$0xf]
  %v308 = vld [vmem:[%s2 + $0xc] sm:$0xf]
  %v309 = vld [vmem:[%s2 + $0x10] sm:$0xf]
  %v310 = vld [vmem:[%s2 + $0x14] sm:$0xf]
  %v311 = vld [vmem:[%s2 + $0x18] sm:$0xf]
  %v312 = vld [vmem:[%s2 + $0x1c] sm:$0xf]
  %v313 = vld [vmem:[%s2 + $0x20] sm:$0xf]
  %v314 = vld [vmem:[%s2 + $0x24] sm:$0xf]
  %v315 = vld [vmem:[%s2 + $0x28] sm:$0xf]
  %v316 = vld [vmem:[%s2 + $0x2c] sm:$0xf]
  %v317 = vld [vmem:[%s2 + $0x30] sm:$0xf]
  %v318 = vld [vmem:[%s2 + $0x34] sm:$0xf]
  %v319 = vld [vmem:[%s2 + $0x38] sm:$0xf]
  %v320 = vld [vmem:[%s2 + $0x3c] sm:$0xf]
  %v337 = vunpack.c.l.b16 %v305
  %v338 = vunpack.c.l.b16 %v306
  %v339 = vunpack.c.l.b16 %v307
  %v340 = vunpack.c.l.b16 %v308
  %v341 = vunpack.c.l.b16 %v309
  %v342 = vunpack.c.l.b16 %v310
  %v343 = vunpack.c.l.b16 %v311
  %v344 = vunpack.c.l.b16 %v312
  %v345 = vunpack.c.l.b16 %v313
  %v346 = vunpack.c.l.b16 %v314
  %v347 = vunpack.c.l.b16 %v315
  %v348 = vunpack.c.l.b16 %v316
  %v349 = vunpack.c.l.b16 %v317
  %v350 = vunpack.c.l.b16 %v318
  %v351 = vunpack.c.l.b16 %v319
  %v352 = vunpack.c.l.b16 %v320
  %v353 = vpack.c.b16 %v338, %v337
  %v354 = vpack.c.b16 %v340, %v339
  %v355 = vpack.c.b16 %v342, %v341
  %v356 = vpack.c.b16 %v344, %v343
  %v357 = vpack.c.b16 %v346, %v345
  %v358 = vpack.c.b16 %v348, %v347
  %v359 = vpack.c.b16 %v350, %v349
  %v360 = vpack.c.b16 %v352, %v351
  %369 = vmatprep.subr.bf16.mxu0 0
  %370 = vmatpush1.bf16.msra.mxu0 %v353
  %371 = vmatprep.subr.bf16.mxu0 0
  %372 = vmatpush1.bf16.msra.mxu0 %v354
  %373 = vmatprep.subr.bf16.mxu0 0
  %374 = vmatpush1.bf16.msra.mxu0 %v355
  %375 = vmatprep.subr.bf16.mxu0 0
  %376 = vmatpush1.bf16.msra.mxu0 %v356
  %377 = vmatprep.subr.bf16.mxu0 0
  %378 = vmatpush1.bf16.msra.mxu0 %v357
  %379 = vmatprep.subr.bf16.mxu0 0
  %380 = vmatpush1.bf16.msra.mxu0 %v358
  %381 = vmatprep.subr.bf16.mxu0 0
  %382 = vmatpush1.bf16.msra.mxu0 %v359
  %383 = vmatprep.subr.bf16.mxu0 0
  %384 = vmatpush1.bf16.msra.mxu0 %v360
  %385 = vmatprep.subr.bf16.mxu0 0
  %386 = vmatpush1.bf16.msra.mxu0 0
  %387 = vmatprep.subr.bf16.mxu0 0
  %388 = vmatpush1.bf16.msra.mxu0 0
  %389 = vmatprep.subr.bf16.mxu0 0
  %390 = vmatpush1.bf16.msra.mxu0 0
  %391 = vmatprep.subr.bf16.mxu0 0
  %392 = vmatpush1.bf16.msra.mxu0 0
  %393 = vmatprep.subr.bf16.mxu0 0
  %394 = vmatpush1.bf16.msra.mxu0 0
  %395 = vmatprep.subr.bf16.mxu0 0
  %396 = vmatpush1.bf16.msra.mxu0 0
  %397 = vmatprep.subr.bf16.mxu0 0
  %398 = vmatpush1.bf16.msra.mxu0 0
  %399 = vmatprep.subr.bf16.mxu0 0
  %400 = vmatpush1.bf16.msra.mxu0 0
  %401 = vmatprep.mubr.bf16.mxu0 0
  %402 = vmatmul.mubr.bf16.gmra.mrb[0].mxu0 %v297
  %v403 = vpop.f32.mrb[0].mxu0
  %v404 = vadd.f32 0.0, %v403
  %v405 = vpop.f32.mrb[0].mxu0
  %v406 = vpop.f32.mrb[0].mxu0
  %v407 = vadd.f32 0.0, %v406
  %v408 = vpop.f32.mrb[0].mxu0
  %409 = vmatprep.mubr.bf16.mxu0 0
  %410 = vmatmul.mubr.bf16.gmra.mrb[0].mxu0 %v298
  %v411 = vpop.f32.mrb[0].mxu0
  %v412 = vadd.f32 0.0, %v411
  %v413 = vpop.f32.mrb[0].mxu0
  %v414 = vpop.f32.mrb[0].mxu0
  %v415 = vadd.f32 0.0, %v414
  %v416 = vpop.f32.mrb[0].mxu0
  %417 = vmatprep.mubr.bf16.mxu0 0
  %418 = vmatmul.mubr.bf16.gmra.mrb[0].mxu0 %v299
  %v419 = vpop.f32.mrb[0].mxu0
  %v420 = vadd.f32 0.0, %v419
  %v421 = vpop.f32.mrb[0].mxu0
  %v422 = vpop.f32.mrb[0].mxu0
  %v423 = vadd.f32 0.0, %v422
  %v424 = vpop.f32.mrb[0].mxu0
  %425 = vmatprep.mubr.bf16.mxu0 0
  %426 = vmatmul.mubr.bf16.gmra.mrb[0].mxu0 %v300
  %v427 = vpop.f32.mrb[0].mxu0
  %v428 = vadd.f32 0.0, %v427
  %v429 = vpop.f32.mrb[0].mxu0
  %v430 = vpop.f32.mrb[0].mxu0
  %v431 = vadd.f32 0.0, %v430
  %v432 = vpop.f32.mrb[0].mxu0
  %433 = vmatprep.mubr.bf16.mxu0 0
  %434 = vmatmul.mubr.bf16.gmra.mrb[0].mxu0 %v301
  %v435 = vpop.f32.mrb[0].mxu0
  %v436 = vadd.f32 0.0, %v435
  %v437 = vpop.f32.mrb[0].mxu0
  %v438 = vpop.f32.mrb[0].mxu0
  %v439 = vadd.f32 0.0, %v438
  %v440 = vpop.f32.mrb[0].mxu0
  %441 = vmatprep.mubr.bf16.mxu0 0
  %442 = vmatmul.mubr.bf16.gmra.mrb[0].mxu0 %v302
  %v443 = vpop.f32.mrb[0].mxu0
  %v444 = vadd.f32 0.0, %v443
  %v445 = vpop.f32.mrb[0].mxu0
  %v446 = vpop.f32.mrb[0].mxu0
  %v447 = vadd.f32 0.0, %v446
  %v448 = vpop.f32.mrb[0].mxu0
  %449 = vmatprep.mubr.bf16.mxu0 0
  %450 = vmatmul.mubr.bf16.gmra.mrb[0].mxu0 %v303
  %v451 = vpop.f32.mrb[0].mxu0
  %v452 = vadd.f32 0.0, %v451
  %v453 = vpop.f32.mrb[0].mxu0
  %v454 = vpop.f32.mrb[0].mxu0
  %v455 = vadd.f32 0.0, %v454
  %v456 = vpop.f32.mrb[0].mxu0
  %457 = vmatprep.mubr.bf16.mxu0 0
  %458 = vmatmul.mubr.bf16.gmra.mrb[0].mxu0 %v304
  %v459 = vpop.f32.mrb[0].mxu0
  %v460 = vadd.f32 0.0, %v459
  %v461 = vpop.f32.mrb[0].mxu0
  %v462 = vpop.f32.mrb[0].mxu0
  %v463 = vadd.f32 0.0, %v462
  %v464 = vpop.f32.mrb[0].mxu0
  %465 = vdwg.mxu0
  %s466 = smul.u32 0, 128
  %v467 = vlaneseq
  %v468 = vand.u32 %v467, 127
  %v469 = vstv %s466
  %v470 = vadd.s32 %v469, %v468
  %vm471 = vcmp.lt.s32.totalorder %v470, 16
  %v472 = vsel %vm471, %v404, -1e+30
  %v473 = vsel %vm471, %v407, -1e+30
  %v474 = vsel %vm471, %v412, -1e+30
  %v475 = vsel %vm471, %v415, -1e+30
  %v476 = vsel %vm471, %v420, -1e+30
  %v477 = vsel %vm471, %v423, -1e+30
  %v478 = vsel %vm471, %v428, -1e+30
  %v479 = vsel %vm471, %v431, -1e+30
  %v480 = vsel %vm471, %v436, -1e+30
  %v481 = vsel %vm471, %v439, -1e+30
  %v482 = vsel %vm471, %v444, -1e+30
  %v483 = vsel %vm471, %v447, -1e+30
  %v484 = vsel %vm471, %v452, -1e+30
  %v485 = vsel %vm471, %v455, -1e+30
  %v486 = vsel %vm471, %v460, -1e+30
  %v487 = vsel %vm471, %v463, -1e+30
  %v488 = vld [vmem:[%s3] sm:$0xff]
  %v489 = vld [vmem:[%s3 + $0x8] sm:$0xff]
  %v490 = vld [vmem:[%s3 + $0x10] sm:$0xff]
  %v491 = vld [vmem:[%s3 + $0x18] sm:$0xff]
  %v492 = vld [vmem:[%s3 + $0x20] sm:$0xff]
  %v493 = vld [vmem:[%s3 + $0x28] sm:$0xff]
  %v494 = vld [vmem:[%s3 + $0x30] sm:$0xff]
  %v495 = vld [vmem:[%s3 + $0x38] sm:$0xff]
  %v496 = vld [vmem:[%s3 + $0x40] sm:$0xff]
  %v497 = vld [vmem:[%s3 + $0x48] sm:$0xff]
  %v498 = vld [vmem:[%s3 + $0x50] sm:$0xff]
  %v499 = vld [vmem:[%s3 + $0x58] sm:$0xff]
  %v500 = vld [vmem:[%s3 + $0x60] sm:$0xff]
  %v501 = vld [vmem:[%s3 + $0x68] sm:$0xff]
  %v502 = vld [vmem:[%s3 + $0x70] sm:$0xff]
  %v503 = vld [vmem:[%s3 + $0x78] sm:$0xff]
  %v504 = vld [vmem:[#allocation4] sm:$0xff]
  %v505 = vld [vmem:[#allocation4 + $0x8] sm:$0xff]
  %v506 = vld [vmem:[#allocation4 + $0x10] sm:$0xff]
  %v507 = vld [vmem:[#allocation4 + $0x18] sm:$0xff]
  %v508 = vld [vmem:[#allocation4 + $0x20] sm:$0xff]
  %v509 = vld [vmem:[#allocation4 + $0x28] sm:$0xff]
  %v510 = vld [vmem:[#allocation4 + $0x30] sm:$0xff]
  %v511 = vld [vmem:[#allocation4 + $0x38] sm:$0xff]
  %v512 = vld [vmem:[#allocation4 + $0x40] sm:$0xff]
  %v513 = vld [vmem:[#allocation4 + $0x48] sm:$0xff]
  %v514 = vld [vmem:[#allocation4 + $0x50] sm:$0xff]
  %v515 = vld [vmem:[#allocation4 + $0x58] sm:$0xff]
  %v516 = vld [vmem:[#allocation4 + $0x60] sm:$0xff]
  %v517 = vld [vmem:[#allocation4 + $0x68] sm:$0xff]
  %v518 = vld [vmem:[#allocation4 + $0x70] sm:$0xff]
  %v519 = vld [vmem:[#allocation4 + $0x78] sm:$0xff]
  %520 = vset.pattern.permute.xlu0 0
  %521 = vperm.xlu0 %520, %v488
  %v522 = vpop.permute.xlu0 %521
  %523 = vset.pattern.permute.xlu0 0
  %524 = vperm.xlu0 %523, %v489
  %v525 = vpop.permute.xlu0 %524
  %526 = vset.pattern.permute.xlu0 0
  %527 = vperm.xlu0 %526, %v490
  %v528 = vpop.permute.xlu0 %527
  %529 = vset.pattern.permute.xlu0 0
  %530 = vperm.xlu0 %529, %v491
  %v531 = vpop.permute.xlu0 %530
  %532 = vset.pattern.permute.xlu0 0
  %533 = vperm.xlu0 %532, %v492
  %v534 = vpop.permute.xlu0 %533
  %535 = vset.pattern.permute.xlu0 0
  %536 = vperm.xlu0 %535, %v493
  %v537 = vpop.permute.xlu0 %536
  %538 = vset.pattern.permute.xlu0 0
  %539 = vperm.xlu0 %538, %v494
  %v540 = vpop.permute.xlu0 %539
  %541 = vset.pattern.permute.xlu0 0
  %542 = vperm.xlu0 %541, %v495
  %v543 = vpop.permute.xlu0 %542
  %544 = vset.pattern.permute.xlu0 0
  %545 = vperm.xlu0 %544, %v496
  %v546 = vpop.permute.xlu0 %545
  %547 = vset.pattern.permute.xlu0 0
  %548 = vperm.xlu0 %547, %v497
  %v549 = vpop.permute.xlu0 %548
  %550 = vset.pattern.permute.xlu0 0
  %551 = vperm.xlu0 %550, %v498
  %v552 = vpop.permute.xlu0 %551
  %553 = vset.pattern.permute.xlu0 0
  %554 = vperm.xlu0 %553, %v499
  %v555 = vpop.permute.xlu0 %554
  %556 = vset.pattern.permute.xlu0 0
  %557 = vperm.xlu0 %556, %v500
  %v558 = vpop.permute.xlu0 %557
  %559 = vset.pattern.permute.xlu0 0
  %560 = vperm.xlu0 %559, %v501
  %v561 = vpop.permute.xlu0 %560
  %562 = vset.pattern.permute.xlu0 0
  %563 = vperm.xlu0 %562, %v502
  %v564 = vpop.permute.xlu0 %563
  %565 = vset.pattern.permute.xlu0 0
  %566 = vperm.xlu0 %565, %v503
  %v567 = vpop.permute.xlu0 %566
  %vm568 = vcmp.eq.s32.totalorder %v470, %v522
  %vm569 = vcmp.eq.s32.totalorder %v470, %v525
  %vm570 = vcmp.eq.s32.totalorder %v470, %v528
  %vm571 = vcmp.eq.s32.totalorder %v470, %v531
  %vm572 = vcmp.eq.s32.totalorder %v470, %v534
  %vm573 = vcmp.eq.s32.totalorder %v470, %v537
  %vm574 = vcmp.eq.s32.totalorder %v470, %v540
  %vm575 = vcmp.eq.s32.totalorder %v470, %v543
  %vm576 = vcmp.eq.s32.totalorder %v470, %v546
  %vm577 = vcmp.eq.s32.totalorder %v470, %v549
  %vm578 = vcmp.eq.s32.totalorder %v470, %v552
  %vm579 = vcmp.eq.s32.totalorder %v470, %v555
  %vm580 = vcmp.eq.s32.totalorder %v470, %v558
  %vm581 = vcmp.eq.s32.totalorder %v470, %v561
  %vm582 = vcmp.eq.s32.totalorder %v470, %v564
  %vm583 = vcmp.eq.s32.totalorder %v470, %v567
  %v584 = vsel %vm568, %v472, 0.0
  %v585 = vsel %vm569, %v473, 0.0
  %v586 = vsel %vm570, %v474, 0.0
  %v587 = vsel %vm571, %v475, 0.0
  %v588 = vsel %vm572, %v476, 0.0
  %v589 = vsel %vm573, %v477, 0.0
  %v590 = vsel %vm574, %v478, 0.0
  %v591 = vsel %vm575, %v479, 0.0
  %v592 = vsel %vm576, %v480, 0.0
  %v593 = vsel %vm577, %v481, 0.0
  %v594 = vsel %vm578, %v482, 0.0
  %v595 = vsel %vm579, %v483, 0.0
  %v596 = vsel %vm580, %v484, 0.0
  %v597 = vsel %vm581, %v485, 0.0
  %v598 = vsel %vm582, %v486, 0.0
  %v599 = vsel %vm583, %v487, 0.0
  %600 = vadd.xlane.f32.xlu0 %v584
  %v601 = vpop.xlane.xlu0 %600
  %602 = vadd.xlane.f32.xlu0 %v585
  %v603 = vpop.xlane.xlu0 %602
  %604 = vadd.xlane.f32.xlu0 %v586
  %v605 = vpop.xlane.xlu0 %604
  %606 = vadd.xlane.f32.xlu0 %v587
  %v607 = vpop.xlane.xlu0 %606
  %608 = vadd.xlane.f32.xlu0 %v588
  %v609 = vpop.xlane.xlu0 %608
  %610 = vadd.xlane.f32.xlu0 %v589
  %v611 = vpop.xlane.xlu0 %610
  %612 = vadd.xlane.f32.xlu0 %v590
  %v613 = vpop.xlane.xlu0 %612
  %614 = vadd.xlane.f32.xlu0 %v591
  %v615 = vpop.xlane.xlu0 %614
  %616 = vadd.xlane.f32.xlu0 %v592
  %v617 = vpop.xlane.xlu0 %616
  %618 = vadd.xlane.f32.xlu0 %v593
  %v619 = vpop.xlane.xlu0 %618
  %620 = vadd.xlane.f32.xlu0 %v594
  %v621 = vpop.xlane.xlu0 %620
  %622 = vadd.xlane.f32.xlu0 %v595
  %v623 = vpop.xlane.xlu0 %622
  %624 = vadd.xlane.f32.xlu0 %v596
  %v625 = vpop.xlane.xlu0 %624
  %626 = vadd.xlane.f32.xlu0 %v597
  %v627 = vpop.xlane.xlu0 %626
  %628 = vadd.xlane.f32.xlu0 %v598
  %v629 = vpop.xlane.xlu0 %628
  %630 = vadd.xlane.f32.xlu0 %v599
  %v631 = vpop.xlane.xlu0 %630
  %v632 = vadd.f32 %v504, %v601
  %v633 = vadd.f32 %v505, %v603
  %v634 = vadd.f32 %v506, %v605
  %v635 = vadd.f32 %v507, %v607
  %v636 = vadd.f32 %v508, %v609
  %v637 = vadd.f32 %v509, %v611
  %v638 = vadd.f32 %v510, %v613
  %v639 = vadd.f32 %v511, %v615
  %v640 = vadd.f32 %v512, %v617
  %v641 = vadd.f32 %v513, %v619
  %v642 = vadd.f32 %v514, %v621
  %v643 = vadd.f32 %v515, %v623
  %v644 = vadd.f32 %v516, %v625
  %v645 = vadd.f32 %v517, %v627
  %v646 = vadd.f32 %v518, %v629
  %v647 = vadd.f32 %v519, %v631
  %vm648 = vcmask 7168
  %649 = vst.msk [vmem:[#allocation4] sm:$0xff] %vm648, %v632
  %650 = vst.msk [vmem:[#allocation4 + $0x8] sm:$0xff] %vm648, %v633
  %651 = vst.msk [vmem:[#allocation4 + $0x10] sm:$0xff] %vm648, %v634
  %652 = vst.msk [vmem:[#allocation4 + $0x18] sm:$0xff] %vm648, %v635
  %653 = vst.msk [vmem:[#allocation4 + $0x20] sm:$0xff] %vm648, %v636
  %654 = vst.msk [vmem:[#allocation4 + $0x28] sm:$0xff] %vm648, %v637
  %655 = vst.msk [vmem:[#allocation4 + $0x30] sm:$0xff] %vm648, %v638
  %656 = vst.msk [vmem:[#allocation4 + $0x38] sm:$0xff] %vm648, %v639
  %657 = vst.msk [vmem:[#allocation4 + $0x40] sm:$0xff] %vm648, %v640
  %658 = vst.msk [vmem:[#allocation4 + $0x48] sm:$0xff] %vm648, %v641
  %659 = vst.msk [vmem:[#allocation4 + $0x50] sm:$0xff] %vm648, %v642
  %660 = vst.msk [vmem:[#allocation4 + $0x58] sm:$0xff] %vm648, %v643
  %661 = vst.msk [vmem:[#allocation4 + $0x60] sm:$0xff] %vm648, %v644
  %662 = vst.msk [vmem:[#allocation4 + $0x68] sm:$0xff] %vm648, %v645
  %663 = vst.msk [vmem:[#allocation4 + $0x70] sm:$0xff] %vm648, %v646
  %664 = vst.msk [vmem:[#allocation4 + $0x78] sm:$0xff] %vm648, %v647
  %v665 = vld [vmem:[#allocation2] sm:$0xff]
  %v666 = vld [vmem:[#allocation2 + $0x8] sm:$0xff]
  %v667 = vld [vmem:[#allocation2 + $0x10] sm:$0xff]
  %v668 = vld [vmem:[#allocation2 + $0x18] sm:$0xff]
  %v669 = vld [vmem:[#allocation2 + $0x20] sm:$0xff]
  %v670 = vld [vmem:[#allocation2 + $0x28] sm:$0xff]
  %v671 = vld [vmem:[#allocation2 + $0x30] sm:$0xff]
  %v672 = vld [vmem:[#allocation2 + $0x38] sm:$0xff]
  %v673 = vld [vmem:[#allocation2 + $0x40] sm:$0xff]
  %v674 = vld [vmem:[#allocation2 + $0x48] sm:$0xff]
  %v675 = vld [vmem:[#allocation2 + $0x50] sm:$0xff]
  %v676 = vld [vmem:[#allocation2 + $0x58] sm:$0xff]
  %v677 = vld [vmem:[#allocation2 + $0x60] sm:$0xff]
  %v678 = vld [vmem:[#allocation2 + $0x68] sm:$0xff]
  %v679 = vld [vmem:[#allocation2 + $0x70] sm:$0xff]
  %v680 = vld [vmem:[#allocation2 + $0x78] sm:$0xff]
  %681 = vmax.xlane.f32.xlu0 %v472
  %v682 = vpop.xlane.xlu0 %681
  %683 = vmax.xlane.f32.xlu0 %v473
  %v684 = vpop.xlane.xlu0 %683
  %685 = vmax.xlane.f32.xlu0 %v474
  %v686 = vpop.xlane.xlu0 %685
  %687 = vmax.xlane.f32.xlu0 %v475
  %v688 = vpop.xlane.xlu0 %687
  %689 = vmax.xlane.f32.xlu0 %v476
  %v690 = vpop.xlane.xlu0 %689
  %691 = vmax.xlane.f32.xlu0 %v477
  %v692 = vpop.xlane.xlu0 %691
  %693 = vmax.xlane.f32.xlu0 %v478
  %v694 = vpop.xlane.xlu0 %693
  %695 = vmax.xlane.f32.xlu0 %v479
  %v696 = vpop.xlane.xlu0 %695
  %697 = vmax.xlane.f32.xlu0 %v480
  %v698 = vpop.xlane.xlu0 %697
  %699 = vmax.xlane.f32.xlu0 %v481
  %v700 = vpop.xlane.xlu0 %699
  %701 = vmax.xlane.f32.xlu0 %v482
  %v702 = vpop.xlane.xlu0 %701
  %703 = vmax.xlane.f32.xlu0 %v483
  %v704 = vpop.xlane.xlu0 %703
  %705 = vmax.xlane.f32.xlu0 %v484
  %v706 = vpop.xlane.xlu0 %705
  %707 = vmax.xlane.f32.xlu0 %v485
  %v708 = vpop.xlane.xlu0 %707
  %709 = vmax.xlane.f32.xlu0 %v486
  %v710 = vpop.xlane.xlu0 %709
  %711 = vmax.xlane.f32.xlu0 %v487
  %v712 = vpop.xlane.xlu0 %711
  %v713 = vmax.f32 %v665, %v682
  %v714 = vmax.f32 %v666, %v684
  %v715 = vmax.f32 %v667, %v686
  %v716 = vmax.f32 %v668, %v688
  %v717 = vmax.f32 %v669, %v690
  %v718 = vmax.f32 %v670, %v692
  %v719 = vmax.f32 %v671, %v694
  %v720 = vmax.f32 %v672, %v696
  %v721 = vmax.f32 %v673, %v698
  %v722 = vmax.f32 %v674, %v700
  %v723 = vmax.f32 %v675, %v702
  %v724 = vmax.f32 %v676, %v704
  %v725 = vmax.f32 %v677, %v706
  %v726 = vmax.f32 %v678, %v708
  %v727 = vmax.f32 %v679, %v710
  %v728 = vmax.f32 %v680, %v712
  %v729 = vld [vmem:[#allocation3] sm:$0xff]
  %v730 = vld [vmem:[#allocation3 + $0x8] sm:$0xff]
  %v731 = vld [vmem:[#allocation3 + $0x10] sm:$0xff]
  %v732 = vld [vmem:[#allocation3 + $0x18] sm:$0xff]
  %v733 = vld [vmem:[#allocation3 + $0x20] sm:$0xff]
  %v734 = vld [vmem:[#allocation3 + $0x28] sm:$0xff]
  %v735 = vld [vmem:[#allocation3 + $0x30] sm:$0xff]
  %v736 = vld [vmem:[#allocation3 + $0x38] sm:$0xff]
  %v737 = vld [vmem:[#allocation3 + $0x40] sm:$0xff]
  %v738 = vld [vmem:[#allocation3 + $0x48] sm:$0xff]
  %v739 = vld [vmem:[#allocation3 + $0x50] sm:$0xff]
  %v740 = vld [vmem:[#allocation3 + $0x58] sm:$0xff]
  %v741 = vld [vmem:[#allocation3 + $0x60] sm:$0xff]
  %v742 = vld [vmem:[#allocation3 + $0x68] sm:$0xff]
  %v743 = vld [vmem:[#allocation3 + $0x70] sm:$0xff]
  %v744 = vld [vmem:[#allocation3 + $0x78] sm:$0xff]
  %v745 = vsub.f32 %v665, %v713
  %v746 = vsub.f32 %v666, %v714
  %v747 = vsub.f32 %v667, %v715
  %v748 = vsub.f32 %v668, %v716
  %v749 = vsub.f32 %v669, %v717
  %v750 = vsub.f32 %v670, %v718
  %v751 = vsub.f32 %v671, %v719
  %v752 = vsub.f32 %v672, %v720
  %v753 = vsub.f32 %v673, %v721
  %v754 = vsub.f32 %v674, %v722
  %v755 = vsub.f32 %v675, %v723
  %v756 = vsub.f32 %v676, %v724
  %v757 = vsub.f32 %v677, %v725
  %v758 = vsub.f32 %v678, %v726
  %v759 = vsub.f32 %v679, %v727
  %v760 = vsub.f32 %v680, %v728
  %v761 = vmul.f32 %v745, 1.442695
  %v762 = vpow.pop %v761
  %v763 = vmul.f32 %v746, 1.442695
  %v764 = vpow.pop %v763
  %v765 = vmul.f32 %v747, 1.442695
  %v766 = vpow.pop %v765
  %v767 = vmul.f32 %v748, 1.442695
  %v768 = vpow.pop %v767
  %v769 = vmul.f32 %v749, 1.442695
  %v770 = vpow.pop %v769
  %v771 = vmul.f32 %v750, 1.442695
  %v772 = vpow.pop %v771
  %v773 = vmul.f32 %v751, 1.442695
  %v774 = vpow.pop %v773
  %v775 = vmul.f32 %v752, 1.442695
  %v776 = vpow.pop %v775
  %v777 = vmul.f32 %v753, 1.442695
  %v778 = vpow.pop %v777
  %v779 = vmul.f32 %v754, 1.442695
  %v780 = vpow.pop %v779
  %v781 = vmul.f32 %v755, 1.442695
  %v782 = vpow.pop %v781
  %v783 = vmul.f32 %v756, 1.442695
  %v784 = vpow.pop %v783
  %v785 = vmul.f32 %v757, 1.442695
  %v786 = vpow.pop %v785
  %v787 = vmul.f32 %v758, 1.442695
  %v788 = vpow.pop %v787
  %v789 = vmul.f32 %v759, 1.442695
  %v790 = vpow.pop %v789
  %v791 = vmul.f32 %v760, 1.442695
  %v792 = vpow.pop %v791
  %v793 = vmul.f32 %v729, %v762
  %v794 = vmul.f32 %v730, %v764
  %v795 = vmul.f32 %v731, %v766
  %v796 = vmul.f32 %v732, %v768
  %v797 = vmul.f32 %v733, %v770
  %v798 = vmul.f32 %v734, %v772
  %v799 = vmul.f32 %v735, %v774
  %v800 = vmul.f32 %v736, %v776
  %v801 = vmul.f32 %v737, %v778
  %v802 = vmul.f32 %v738, %v780
  %v803 = vmul.f32 %v739, %v782
  %v804 = vmul.f32 %v740, %v784
  %v805 = vmul.f32 %v741, %v786
  %v806 = vmul.f32 %v742, %v788
  %v807 = vmul.f32 %v743, %v790
  %v808 = vmul.f32 %v744, %v792
  %810 = vset.pattern.permute.xlu0 0
  %811 = vperm.xlu0 %810, %v713
  %v812 = vpop.permute.xlu0 %811
  %815 = vset.pattern.permute.xlu0 0
  %816 = vperm.xlu0 %815, %v714
  %v817 = vpop.permute.xlu0 %816
  %820 = vset.pattern.permute.xlu0 0
  %821 = vperm.xlu0 %820, %v715
  %v822 = vpop.permute.xlu0 %821
  %825 = vset.pattern.permute.xlu0 0
  %826 = vperm.xlu0 %825, %v716
  %v827 = vpop.permute.xlu0 %826
  %830 = vset.pattern.permute.xlu0 0
  %831 = vperm.xlu0 %830, %v717
  %v832 = vpop.permute.xlu0 %831
  %835 = vset.pattern.permute.xlu0 0
  %836 = vperm.xlu0 %835, %v718
  %v837 = vpop.permute.xlu0 %836
  %840 = vset.pattern.permute.xlu0 0
  %841 = vperm.xlu0 %840, %v719
  %v842 = vpop.permute.xlu0 %841
  %845 = vset.pattern.permute.xlu0 0
  %846 = vperm.xlu0 %845, %v720
  %v847 = vpop.permute.xlu0 %846
  %850 = vset.pattern.permute.xlu0 0
  %851 = vperm.xlu0 %850, %v721
  %v852 = vpop.permute.xlu0 %851
  %855 = vset.pattern.permute.xlu0 0
  %856 = vperm.xlu0 %855, %v722
  %v857 = vpop.permute.xlu0 %856
  %860 = vset.pattern.permute.xlu0 0
  %861 = vperm.xlu0 %860, %v723
  %v862 = vpop.permute.xlu0 %861
  %865 = vset.pattern.permute.xlu0 0
  %866 = vperm.xlu0 %865, %v724
  %v867 = vpop.permute.xlu0 %866
  %870 = vset.pattern.permute.xlu0 0
  %871 = vperm.xlu0 %870, %v725
  %v872 = vpop.permute.xlu0 %871
  %875 = vset.pattern.permute.xlu0 0
  %876 = vperm.xlu0 %875, %v726
  %v877 = vpop.permute.xlu0 %876
  %880 = vset.pattern.permute.xlu0 0
  %881 = vperm.xlu0 %880, %v727
  %v882 = vpop.permute.xlu0 %881
  %885 = vset.pattern.permute.xlu0 0
  %886 = vperm.xlu0 %885, %v728
  %v887 = vpop.permute.xlu0 %886
  %v889 = vsub.f32 %v472, %v812
  %v890 = vsub.f32 %v473, %v817
  %v891 = vsub.f32 %v474, %v822
  %v892 = vsub.f32 %v475, %v827
  %v893 = vsub.f32 %v476, %v832
  %v894 = vsub.f32 %v477, %v837
  %v895 = vsub.f32 %v478, %v842
  %v896 = vsub.f32 %v479, %v847
  %v897 = vsub.f32 %v480, %v852
  %v898 = vsub.f32 %v481, %v857
  %v899 = vsub.f32 %v482, %v862
  %v900 = vsub.f32 %v483, %v867
  %v901 = vsub.f32 %v484, %v872
  %v902 = vsub.f32 %v485, %v877
  %v903 = vsub.f32 %v486, %v882
  %v904 = vsub.f32 %v487, %v887
  %v905 = vmul.f32 %v889, 1.442695
  %v906 = vpow.pop %v905
  %v907 = vmul.f32 %v890, 1.442695
  %v908 = vpow.pop %v907
  %v909 = vmul.f32 %v891, 1.442695
  %v910 = vpow.pop %v909
  %v911 = vmul.f32 %v892, 1.442695
  %v912 = vpow.pop %v911
  %v913 = vmul.f32 %v893, 1.442695
  %v914 = vpow.pop %v913
  %v915 = vmul.f32 %v894, 1.442695
  %v916 = vpow.pop %v915
  %v917 = vmul.f32 %v895, 1.442695
  %v918 = vpow.pop %v917
  %v919 = vmul.f32 %v896, 1.442695
  %v920 = vpow.pop %v919
  %v921 = vmul.f32 %v897, 1.442695
  %v922 = vpow.pop %v921
  %v923 = vmul.f32 %v898, 1.442695
  %v924 = vpow.pop %v923
  %v925 = vmul.f32 %v899, 1.442695
  %v926 = vpow.pop %v925
  %v927 = vmul.f32 %v900, 1.442695
  %v928 = vpow.pop %v927
  %v929 = vmul.f32 %v901, 1.442695
  %v930 = vpow.pop %v929
  %v931 = vmul.f32 %v902, 1.442695
  %v932 = vpow.pop %v931
  %v933 = vmul.f32 %v903, 1.442695
  %v934 = vpow.pop %v933
  %v935 = vmul.f32 %v904, 1.442695
  %v936 = vpow.pop %v935
  %937 = vadd.xlane.f32.xlu0 %v906
  %v938 = vpop.xlane.xlu0 %937
  %939 = vadd.xlane.f32.xlu0 %v908
  %v940 = vpop.xlane.xlu0 %939
  %941 = vadd.xlane.f32.xlu0 %v910
  %v942 = vpop.xlane.xlu0 %941
  %943 = vadd.xlane.f32.xlu0 %v912
  %v944 = vpop.xlane.xlu0 %943
  %945 = vadd.xlane.f32.xlu0 %v914
  %v946 = vpop.xlane.xlu0 %945
  %947 = vadd.xlane.f32.xlu0 %v916
  %v948 = vpop.xlane.xlu0 %947
  %949 = vadd.xlane.f32.xlu0 %v918
  %v950 = vpop.xlane.xlu0 %949
  %951 = vadd.xlane.f32.xlu0 %v920
  %v952 = vpop.xlane.xlu0 %951
  %953 = vadd.xlane.f32.xlu0 %v922
  %v954 = vpop.xlane.xlu0 %953
  %955 = vadd.xlane.f32.xlu0 %v924
  %v956 = vpop.xlane.xlu0 %955
  %957 = vadd.xlane.f32.xlu0 %v926
  %v958 = vpop.xlane.xlu0 %957
  %959 = vadd.xlane.f32.xlu0 %v928
  %v960 = vpop.xlane.xlu0 %959
  %961 = vadd.xlane.f32.xlu0 %v930
  %v962 = vpop.xlane.xlu0 %961
  %963 = vadd.xlane.f32.xlu0 %v932
  %v964 = vpop.xlane.xlu0 %963
  %965 = vadd.xlane.f32.xlu0 %v934
  %v966 = vpop.xlane.xlu0 %965
  %967 = vadd.xlane.f32.xlu0 %v936
  %v968 = vpop.xlane.xlu0 %967
  %v969 = vadd.f32 %v793, %v938
  %v970 = vadd.f32 %v794, %v940
  %v971 = vadd.f32 %v795, %v942
  %v972 = vadd.f32 %v796, %v944
  %v973 = vadd.f32 %v797, %v946
  %v974 = vadd.f32 %v798, %v948
  %v975 = vadd.f32 %v799, %v950
  %v976 = vadd.f32 %v800, %v952
  %v977 = vadd.f32 %v801, %v954
  %v978 = vadd.f32 %v802, %v956
  %v979 = vadd.f32 %v803, %v958
  %v980 = vadd.f32 %v804, %v960
  %v981 = vadd.f32 %v805, %v962
  %v982 = vadd.f32 %v806, %v964
  %v983 = vadd.f32 %v807, %v966
  %v984 = vadd.f32 %v808, %v968
  %985 = vst.msk [vmem:[#allocation3] sm:$0xff] %vm648, %v969
  %986 = vst.msk [vmem:[#allocation3 + $0x8] sm:$0xff] %vm648, %v970
  %987 = vst.msk [vmem:[#allocation3 + $0x10] sm:$0xff] %vm648, %v971
  %988 = vst.msk [vmem:[#allocation3 + $0x18] sm:$0xff] %vm648, %v972
  %989 = vst.msk [vmem:[#allocation3 + $0x20] sm:$0xff] %vm648, %v973
  %990 = vst.msk [vmem:[#allocation3 + $0x28] sm:$0xff] %vm648, %v974
  %991 = vst.msk [vmem:[#allocation3 + $0x30] sm:$0xff] %vm648, %v975
  %992 = vst.msk [vmem:[#allocation3 + $0x38] sm:$0xff] %vm648, %v976
  %993 = vst.msk [vmem:[#allocation3 + $0x40] sm:$0xff] %vm648, %v977
  %994 = vst.msk [vmem:[#allocation3 + $0x48] sm:$0xff] %vm648, %v978
  %995 = vst.msk [vmem:[#allocation3 + $0x50] sm:$0xff] %vm648, %v979
  %996 = vst.msk [vmem:[#allocation3 + $0x58] sm:$0xff] %vm648, %v980
  %997 = vst.msk [vmem:[#allocation3 + $0x60] sm:$0xff] %vm648, %v981
  %998 = vst.msk [vmem:[#allocation3 + $0x68] sm:$0xff] %vm648, %v982
  %999 = vst.msk [vmem:[#allocation3 + $0x70] sm:$0xff] %vm648, %v983
  %1000 = vst.msk [vmem:[#allocation3 + $0x78] sm:$0xff] %vm648, %v984
  %1001 = vst.msk [vmem:[#allocation2] sm:$0xff] %vm648, %v713
  %1002 = vst.msk [vmem:[#allocation2 + $0x8] sm:$0xff] %vm648, %v714
  %1003 = vst.msk [vmem:[#allocation2 + $0x10] sm:$0xff] %vm648, %v715
  %1004 = vst.msk [vmem:[#allocation2 + $0x18] sm:$0xff] %vm648, %v716
  %1005 = vst.msk [vmem:[#allocation2 + $0x20] sm:$0xff] %vm648, %v717
  %1006 = vst.msk [vmem:[#allocation2 + $0x28] sm:$0xff] %vm648, %v718
  %1007 = vst.msk [vmem:[#allocation2 + $0x30] sm:$0xff] %vm648, %v719
  %1008 = vst.msk [vmem:[#allocation2 + $0x38] sm:$0xff] %vm648, %v720
  %1009 = vst.msk [vmem:[#allocation2 + $0x40] sm:$0xff] %vm648, %v721
  %1010 = vst.msk [vmem:[#allocation2 + $0x48] sm:$0xff] %vm648, %v722
  %1011 = vst.msk [vmem:[#allocation2 + $0x50] sm:$0xff] %vm648, %v723
  %1012 = vst.msk [vmem:[#allocation2 + $0x58] sm:$0xff] %vm648, %v724
  %1013 = vst.msk [vmem:[#allocation2 + $0x60] sm:$0xff] %vm648, %v725
  %1014 = vst.msk [vmem:[#allocation2 + $0x68] sm:$0xff] %vm648, %v726
  %1015 = vst.msk [vmem:[#allocation2 + $0x70] sm:$0xff] %vm648, %v727
  %1016 = vst.msk [vmem:[#allocation2 + $0x78] sm:$0xff] %vm648, %v728
  // Predicated region
  $region22: #{forward.4} parent=0 // pred_check
    %p1017 = pneg %p18
  $region23: #{forward.4} parent=0 // pred_check_branch
    %1019 = sbr.rel (%p1017) target = $region25
  $region24: #{forward.4} parent=0 // pred_region
    %v1020 = vld [vmem:[#allocation2] sm:$0xff]
    %v1021 = vld [vmem:[#allocation2 + $0x8] sm:$0xff]
    %v1022 = vld [vmem:[#allocation2 + $0x10] sm:$0xff]
    %v1023 = vld [vmem:[#allocation2 + $0x18] sm:$0xff]
    %v1024 = vld [vmem:[#allocation2 + $0x20] sm:$0xff]
    %v1025 = vld [vmem:[#allocation2 + $0x28] sm:$0xff]
    %v1026 = vld [vmem:[#allocation2 + $0x30] sm:$0xff]
    %v1027 = vld [vmem:[#allocation2 + $0x38] sm:$0xff]
    %v1028 = vld [vmem:[#allocation2 + $0x40] sm:$0xff]
    %v1029 = vld [vmem:[#allocation2 + $0x48] sm:$0xff]
    %v1030 = vld [vmem:[#allocation2 + $0x50] sm:$0xff]
    %v1031 = vld [vmem:[#allocation2 + $0x58] sm:$0xff]
    %v1032 = vld [vmem:[#allocation2 + $0x60] sm:$0xff]
    %v1033 = vld [vmem:[#allocation2 + $0x68] sm:$0xff]
    %v1034 = vld [vmem:[#allocation2 + $0x70] sm:$0xff]
    %v1035 = vld [vmem:[#allocation2 + $0x78] sm:$0xff]
    %v1036 = vld [vmem:[#allocation3] sm:$0xff]
    %v1037 = vld [vmem:[#allocation3 + $0x8] sm:$0xff]
    %v1038 = vld [vmem:[#allocation3 + $0x10] sm:$0xff]
    %v1039 = vld [vmem:[#allocation3 + $0x18] sm:$0xff]
    %v1040 = vld [vmem:[#allocation3 + $0x20] sm:$0xff]
    %v1041 = vld [vmem:[#allocation3 + $0x28] sm:$0xff]
    %v1042 = vld [vmem:[#allocation3 + $0x30] sm:$0xff]
    %v1043 = vld [vmem:[#allocation3 + $0x38] sm:$0xff]
    %v1044 = vld [vmem:[#allocation3 + $0x40] sm:$0xff]
    %v1045 = vld [vmem:[#allocation3 + $0x48] sm:$0xff]
    %v1046 = vld [vmem:[#allocation3 + $0x50] sm:$0xff]
    %v1047 = vld [vmem:[#allocation3 + $0x58] sm:$0xff]
    %v1048 = vld [vmem:[#allocation3 + $0x60] sm:$0xff]
    %v1049 = vld [vmem:[#allocation3 + $0x68] sm:$0xff]
    %v1050 = vld [vmem:[#allocation3 + $0x70] sm:$0xff]
    %v1051 = vld [vmem:[#allocation3 + $0x78] sm:$0xff]
    %v1052 = vlog2.pop %v1036
    %v1053 = vmul.f32 %v1052, 0.6931472
    %v1054 = vlog2.pop %v1037
    %v1055 = vmul.f32 %v1054, 0.6931472
    %v1056 = vlog2.pop %v1038
    %v1057 = vmul.f32 %v1056, 0.6931472
    %v1058 = vlog2.pop %v1039
    %v1059 = vmul.f32 %v1058, 0.6931472
    %v1060 = vlog2.pop %v1040
    %v1061 = vmul.f32 %v1060, 0.6931472
    %v1062 = vlog2.pop %v1041
    %v1063 = vmul.f32 %v1062, 0.6931472
    %v1064 = vlog2.pop %v1042
    %v1065 = vmul.f32 %v1064, 0.6931472
    %v1066 = vlog2.pop %v1043
    %v1067 = vmul.f32 %v1066, 0.6931472
    %v1068 = vlog2.pop %v1044
    %v1069 = vmul.f32 %v1068, 0.6931472
    %v1070 = vlog2.pop %v1045
    %v1071 = vmul.f32 %v1070, 0.6931472
    %v1072 = vlog2.pop %v1046
    %v1073 = vmul.f32 %v1072, 0.6931472
    %v1074 = vlog2.pop %v1047
    %v1075 = vmul.f32 %v1074, 0.6931472
    %v1076 = vlog2.pop %v1048
    %v1077 = vmul.f32 %v1076, 0.6931472
    %v1078 = vlog2.pop %v1049
    %v1079 = vmul.f32 %v1078, 0.6931472
    %v1080 = vlog2.pop %v1050
    %v1081 = vmul.f32 %v1080, 0.6931472
    %v1082 = vlog2.pop %v1051
    %v1083 = vmul.f32 %v1082, 0.6931472
    %v1084 = vadd.f32 %v1020, %v1053
    %v1085 = vadd.f32 %v1021, %v1055
    %v1086 = vadd.f32 %v1022, %v1057
    %v1087 = vadd.f32 %v1023, %v1059
    %v1088 = vadd.f32 %v1024, %v1061
    %v1089 = vadd.f32 %v1025, %v1063
    %v1090 = vadd.f32 %v1026, %v1065
    %v1091 = vadd.f32 %v1027, %v1067
    %v1092 = vadd.f32 %v1028, %v1069
    %v1093 = vadd.f32 %v1029, %v1071
    %v1094 = vadd.f32 %v1030, %v1073
    %v1095 = vadd.f32 %v1031, %v1075
    %v1096 = vadd.f32 %v1032, %v1077
    %v1097 = vadd.f32 %v1033, %v1079
    %v1098 = vadd.f32 %v1034, %v1081
    %v1099 = vadd.f32 %v1035, %v1083
    %v1100 = vld [vmem:[%s3] sm:$0xff]
    %v1101 = vld [vmem:[%s3 + $0x8] sm:$0xff]
    %v1102 = vld [vmem:[%s3 + $0x10] sm:$0xff]
    %v1103 = vld [vmem:[%s3 + $0x18] sm:$0xff]
    %v1104 = vld [vmem:[%s3 + $0x20] sm:$0xff]
    %v1105 = vld [vmem:[%s3 + $0x28] sm:$0xff]
    %v1106 = vld [vmem:[%s3 + $0x30] sm:$0xff]
    %v1107 = vld [vmem:[%s3 + $0x38] sm:$0xff]
    %v1108 = vld [vmem:[%s3 + $0x40] sm:$0xff]
    %v1109 = vld [vmem:[%s3 + $0x48] sm:$0xff]
    %v1110 = vld [vmem:[%s3 + $0x50] sm:$0xff]
    %v1111 = vld [vmem:[%s3 + $0x58] sm:$0xff]
    %v1112 = vld [vmem:[%s3 + $0x60] sm:$0xff]
    %v1113 = vld [vmem:[%s3 + $0x68] sm:$0xff]
    %v1114 = vld [vmem:[%s3 + $0x70] sm:$0xff]
    %v1115 = vld [vmem:[%s3 + $0x78] sm:$0xff]
    %vm1116 = vcmp.ge.s32.totalorder %v1100, 0
    %vm1117 = vcmp.ge.s32.totalorder %v1101, 0
    %vm1118 = vcmp.ge.s32.totalorder %v1102, 0
    %vm1119 = vcmp.ge.s32.totalorder %v1103, 0
    %vm1120 = vcmp.ge.s32.totalorder %v1104, 0
    %vm1121 = vcmp.ge.s32.totalorder %v1105, 0
    %vm1122 = vcmp.ge.s32.totalorder %v1106, 0
    %vm1123 = vcmp.ge.s32.totalorder %v1107, 0
    %vm1124 = vcmp.ge.s32.totalorder %v1108, 0
    %vm1125 = vcmp.ge.s32.totalorder %v1109, 0
    %vm1126 = vcmp.ge.s32.totalorder %v1110, 0
    %vm1127 = vcmp.ge.s32.totalorder %v1111, 0
    %vm1128 = vcmp.ge.s32.totalorder %v1112, 0
    %vm1129 = vcmp.ge.s32.totalorder %v1113, 0
    %vm1130 = vcmp.ge.s32.totalorder %v1114, 0
    %vm1131 = vcmp.ge.s32.totalorder %v1115, 0
    %v1132 = vld [vmem:[#allocation4] sm:$0xff]
    %v1133 = vld [vmem:[#allocation4 + $0x8] sm:$0xff]
    %v1134 = vld [vmem:[#allocation4 + $0x10] sm:$0xff]
    %v1135 = vld [vmem:[#allocation4 + $0x18] sm:$0xff]
    %v1136 = vld [vmem:[#allocation4 + $0x20] sm:$0xff]
    %v1137 = vld [vmem:[#allocation4 + $0x28] sm:$0xff]
    %v1138 = vld [vmem:[#allocation4 + $0x30] sm:$0xff]
    %v1139 = vld [vmem:[#allocation4 + $0x38] sm:$0xff]
    %v1140 = vld [vmem:[#allocation4 + $0x40] sm:$0xff]
    %v1141 = vld [vmem:[#allocation4 + $0x48] sm:$0xff]
    %v1142 = vld [vmem:[#allocation4 + $0x50] sm:$0xff]
    %v1143 = vld [vmem:[#allocation4 + $0x58] sm:$0xff]
    %v1144 = vld [vmem:[#allocation4 + $0x60] sm:$0xff]
    %v1145 = vld [vmem:[#allocation4 + $0x68] sm:$0xff]
    %v1146 = vld [vmem:[#allocation4 + $0x70] sm:$0xff]
    %v1147 = vld [vmem:[#allocation4 + $0x78] sm:$0xff]
    %v1148 = vsub.f32 %v1132, %v1084
    %v1149 = vsub.f32 %v1133, %v1085
    %v1150 = vsub.f32 %v1134, %v1086
    %v1151 = vsub.f32 %v1135, %v1087
    %v1152 = vsub.f32 %v1136, %v1088
    %v1153 = vsub.f32 %v1137, %v1089
    %v1154 = vsub.f32 %v1138, %v1090
    %v1155 = vsub.f32 %v1139, %v1091
    %v1156 = vsub.f32 %v1140, %v1092
    %v1157 = vsub.f32 %v1141, %v1093
    %v1158 = vsub.f32 %v1142, %v1094
    %v1159 = vsub.f32 %v1143, %v1095
    %v1160 = vsub.f32 %v1144, %v1096
    %v1161 = vsub.f32 %v1145, %v1097
    %v1162 = vsub.f32 %v1146, %v1098
    %v1163 = vsub.f32 %v1147, %v1099
    %v1164 = vsel %vm1116, %v1148, 0.0
    %v1165 = vsel %vm1117, %v1149, 0.0
    %v1166 = vsel %vm1118, %v1150, 0.0
    %v1167 = vsel %vm1119, %v1151, 0.0
    %v1168 = vsel %vm1120, %v1152, 0.0
    %v1169 = vsel %vm1121, %v1153, 0.0
    %v1170 = vsel %vm1122, %v1154, 0.0
    %v1171 = vsel %vm1123, %v1155, 0.0
    %v1172 = vsel %vm1124, %v1156, 0.0
    %v1173 = vsel %vm1125, %v1157, 0.0
    %v1174 = vsel %vm1126, %v1158, 0.0
    %v1175 = vsel %vm1127, %v1159, 0.0
    %v1176 = vsel %vm1128, %v1160, 0.0
    %v1177 = vsel %vm1129, %v1161, 0.0
    %v1178 = vsel %vm1130, %v1162, 0.0
    %v1179 = vsel %vm1131, %v1163, 0.0
    %1181 = vset.pattern.permute.xlu0 0
    %1182 = vperm.xlu0 %1181, %v1164
    %v1183 = vpop.permute.xlu0 %1182
    %1186 = vset.pattern.permute.xlu0 0
    %1187 = vperm.xlu0 %1186, %v1165
    %v1188 = vpop.permute.xlu0 %1187
    %1191 = vset.pattern.permute.xlu0 0
    %1192 = vperm.xlu0 %1191, %v1166
    %v1193 = vpop.permute.xlu0 %1192
    %1196 = vset.pattern.permute.xlu0 0
    %1197 = vperm.xlu0 %1196, %v1167
    %v1198 = vpop.permute.xlu0 %1197
    %1201 = vset.pattern.permute.xlu0 0
    %1202 = vperm.xlu0 %1201, %v1168
    %v1203 = vpop.permute.xlu0 %1202
    %1206 = vset.pattern.permute.xlu0 0
    %1207 = vperm.xlu0 %1206, %v1169
    %v1208 = vpop.permute.xlu0 %1207
    %1211 = vset.pattern.permute.xlu0 0
    %1212 = vperm.xlu0 %1211, %v1170
    %v1213 = vpop.permute.xlu0 %1212
    %1216 = vset.pattern.permute.xlu0 0
    %1217 = vperm.xlu0 %1216, %v1171
    %v1218 = vpop.permute.xlu0 %1217
    %1221 = vset.pattern.permute.xlu0 0
    %1222 = vperm.xlu0 %1221, %v1172
    %v1223 = vpop.permute.xlu0 %1222
    %1226 = vset.pattern.permute.xlu0 0
    %1227 = vperm.xlu0 %1226, %v1173
    %v1228 = vpop.permute.xlu0 %1227
    %1231 = vset.pattern.permute.xlu0 0
    %1232 = vperm.xlu0 %1231, %v1174
    %v1233 = vpop.permute.xlu0 %1232
    %1236 = vset.pattern.permute.xlu0 0
    %1237 = vperm.xlu0 %1236, %v1175
    %v1238 = vpop.permute.xlu0 %1237
    %1241 = vset.pattern.permute.xlu0 0
    %1242 = vperm.xlu0 %1241, %v1176
    %v1243 = vpop.permute.xlu0 %1242
    %1246 = vset.pattern.permute.xlu0 0
    %1247 = vperm.xlu0 %1246, %v1177
    %v1248 = vpop.permute.xlu0 %1247
    %1251 = vset.pattern.permute.xlu0 0
    %1252 = vperm.xlu0 %1251, %v1178
    %v1253 = vpop.permute.xlu0 %1252
    %1256 = vset.pattern.permute.xlu0 0
    %1257 = vperm.xlu0 %1256, %v1179
    %v1258 = vpop.permute.xlu0 %1257
    %1260 = vst [vmem:[%s4] sm:$0xff] %v1183
    %1261 = vst [vmem:[%s4 + $0x8] sm:$0xff] %v1188
    %1262 = vst [vmem:[%s4 + $0x10] sm:$0xff] %v1193
    %1263 = vst [vmem:[%s4 + $0x18] sm:$0xff] %v1198
    %1264 = vst [vmem:[%s4 + $0x20] sm:$0xff] %v1203
    %1265 = vst [vmem:[%s4 + $0x28] sm:$0xff] %v1208
    %1266 = vst [vmem:[%s4 + $0x30] sm:$0xff] %v1213
    %1267 = vst [vmem:[%s4 + $0x38] sm:$0xff] %v1218
    %1268 = vst [vmem:[%s4 + $0x40] sm:$0xff] %v1223
    %1269 = vst [vmem:[%s4 + $0x48] sm:$0xff] %v1228
    %1270 = vst [vmem:[%s4 + $0x50] sm:$0xff] %v1233
    %1271 = vst [vmem:[%s4 + $0x58] sm:$0xff] %v1238
    %1272 = vst [vmem:[%s4 + $0x60] sm:$0xff] %v1243
    %1273 = vst [vmem:[%s4 + $0x68] sm:$0xff] %v1248
    %1274 = vst [vmem:[%s4 + $0x70] sm:$0xff] %v1253
    %1275 = vst [vmem:[%s4 + $0x78] sm:$0xff] %v1258
  $region25: #{forward.4} parent=0 // pred_fallthru
    _
  // Predicated region
  $region26: #{forward.4} parent=0 // pred_check
    _
  $region27: #{forward.4} parent=0 // pred_check_branch
    %1277 = sbr.rel (0) target = $region29
  $region28: #{forward.4} parent=0 // pred_region
    _
  $region29: #{forward.4} parent=0 // pred_fallthru
    _
  // Predicated region
  $region30: #{forward.4} parent=0 // pred_check
    _
  $region31: #{forward.4} parent=0 // pred_check_branch
    %1279 = sbr.rel (0) target = $region33
  $region32: #{forward.4} parent=0 // pred_region
    _
  $region33: #{forward.4} parent=0 // pred_fallthru
    _

</llo_original>
